<compile_context>
chip_gen: v6e
topology: v6e:2x2x1
jax: 0.10.0
libtpu: 0.0.40
codegen_flags: <defaults>
</compile_context>

<pallas_src>
import math
import functools

import jax
import jax.numpy as jnp
from jax.experimental import pallas as pl
from jax.experimental.pallas import tpu as pltpu


def _layernorm(v, g, b, eps=1e-5):
    mu = jnp.mean(v, axis=-1, keepdims=True)
    var = jnp.mean((v - mu) ** 2, axis=-1, keepdims=True)
    return (v - mu) * jax.lax.rsqrt(var + eps) * g + b


def fused_encoder_kernel(x_ref,
                         wq_ref, wk_ref, wv_ref, bq_ref, bk_ref, bv_ref,
                         wo_ref, bo_ref, g1_ref, be1_ref,
                         w1_ref, fb1_ref, w2_ref, fb2_ref, g2_ref, be2_ref,
                         o_ref, *, nhead):
    # Layer 0: load the input sequence into the resident output block, which
    # doubles as the residual-stream carry across the (arbitrary) layer axis.
    @pl.when(pl.program_id(1) == 0)
    def _():
        o_ref[...] = x_ref[...]

    x = o_ref[...]                                    # (S, D) f32 residual stream
    S, D = x.shape

    # ---- multi-head self attention (heads batched via pre-split weights) ----
    xb = x.astype(jnp.bfloat16)
    xh = jnp.broadcast_to(xb, (nhead, S, D))          # (H, S, D), heads = batch dim

    q = jnp.einsum("hsd,hdf->hsf", xh, wq_ref[...],
                   preferred_element_type=jnp.float32) + bq_ref[...]   # scale pre-folded
    k = jnp.einsum("hsd,hdf->hsf", xh, wk_ref[...],
                   preferred_element_type=jnp.float32) + bk_ref[...]
    v = jnp.einsum("hsd,hdf->hsf", xh, wv_ref[...],
                   preferred_element_type=jnp.float32) + bv_ref[...]

    s = jnp.einsum("hqf,hkf->hqk", q.astype(jnp.bfloat16), k.astype(jnp.bfloat16),
                   preferred_element_type=jnp.float32)                 # (H, S, S)
    s = s - jnp.max(s, axis=-1, keepdims=True)
    p = jnp.exp(s)
    p = p * pl.reciprocal(jnp.sum(p, axis=-1, keepdims=True), approx=True)

    ctx = jnp.einsum("hqk,hkf->hqf", p.astype(jnp.bfloat16), v.astype(jnp.bfloat16),
                     preferred_element_type=jnp.float32)               # (H, S, Hd)

    attn = jnp.einsum("hqf,hfd->hqd", ctx.astype(jnp.bfloat16), wo_ref[...],
                      preferred_element_type=jnp.float32)              # (H, S, D)
    attn = jnp.sum(attn, axis=0) + bo_ref[...]                          # (S, D)

    x = _layernorm(x + attn, g1_ref[...], be1_ref[...])

    # ---- feed forward (relu) -------------------------------------------------
    h1 = jnp.dot(x.astype(jnp.bfloat16), w1_ref[...],
                 preferred_element_type=jnp.float32) + fb1_ref[...]
    h1 = jnp.maximum(h1, 0.0)
    ff = jnp.dot(h1.astype(jnp.bfloat16), w2_ref[...],
                 preferred_element_type=jnp.float32) + fb2_ref[...]
    x = _layernorm(x + ff, g2_ref[...], be2_ref[...])

    o_ref[...] = x.astype(o_ref.dtype)


_WEIGHT_ORDER = ("wq", "wk", "wv", "bq", "bk", "bv", "wo", "bo",
                 "ln1_g", "ln1_b", "w1", "fb1", "w2", "fb2", "ln2_g", "ln2_b")


def prepare_layer_params(params, nhead):
    """Pre-split per head, fold 1/sqrt(head_dim) into wq/bq, cast matmul weights to bf16."""
    D = params["wq"].shape[0]
    Hd = D // nhead
    assert D % nhead == 0, "d_model must be divisible by nhead"
    scale = 1.0 / math.sqrt(Hd)

    split_w = lambda w: jnp.transpose(w.reshape(D, nhead, Hd), (1, 0, 2))  # (H, D, Hd)
    split_b = lambda b: b.reshape(nhead, 1, Hd)                            # (H, 1, Hd)
    bf16 = lambda a: a.astype(jnp.bfloat16)

    return {
        "wq": bf16(split_w(params["wq"]) * scale),
        "wk": bf16(split_w(params["wk"])),
        "wv": bf16(split_w(params["wv"])),
        "bq": split_b(params["bq"]) * scale,
        "bk": split_b(params["bk"]),
        "bv": split_b(params["bv"]),
        "wo": bf16(params["wo"].reshape(nhead, Hd, D)),                    # (H, Hd, D)
        "bo": params["bo"],
        "ln1_g": params["ln1_g"], "ln1_b": params["ln1_b"],
        "w1": bf16(params["w1"]), "fb1": params["fb1"],
        "w2": bf16(params["w2"]), "fb2": params["fb2"],
        "ln2_g": params["ln2_g"], "ln2_b": params["ln2_b"],
    }


def transformer_encoder_pallas(x_bsd, prep, num_layers, nhead):
    """x_bsd: (B, S, D) f32 -> (B, S, D) f32; runs all layers in one kernel."""
    B, S, D = x_bsd.shape
    weights = [prep[k] for k in _WEIGHT_ORDER]
    # Weights are grid-invariant: whole array resident in VMEM, single-buffered.
    vmem_spec = pl.BlockSpec(memory_space=pltpu.MemorySpace.VMEM)

    return pl.pallas_call(
        functools.partial(fused_encoder_kernel, nhead=nhead),
        out_shape=jax.ShapeDtypeStruct((B, S, D), jnp.float32),
        grid_spec=pltpu.PrefetchScalarGridSpec(
            num_scalar_prefetch=0,
            grid=(B, num_layers),
            in_specs=[pl.BlockSpec((None, S, D), lambda b, l: (b, 0, 0))]
                     + [vmem_spec] * len(weights),
            out_specs=pl.BlockSpec((None, S, D), lambda b, l: (b, 0, 0)),
        ),
        compiler_params=pltpu.CompilerParams(
            dimension_semantics=("parallel", "arbitrary"),
            vmem_limit_bytes=48 * 1024 * 1024,
        ),
    )(x_bsd, *weights)


def transformer_encoder_wrapper(src, params, num_layers, nhead):
    """src: (S, B, D) like PyTorch (batch_first=False). Returns (S, B, D)."""
    x = jnp.transpose(src, (1, 0, 2))                  # (B, S, D)
    prep = prepare_layer_params(params, nhead)         # shared by all layers (deepcopy init)
    y = transformer_encoder_pallas(x, prep, num_layers, nhead)
    # TODO(synk): wrapper's optional final `norm` is None here (not applied);
    # src_mask / src_key_padding_mask (None in this path) are not implemented.
    return jnp.transpose(y, (1, 0, 2))


def init_params(key, d_model, dim_feedforward):
    ks = jax.random.split(key, 8)
    n = lambda k, shp: (jax.random.normal(k, shp, jnp.float32) * 0.02)
    D, F = d_model, dim_feedforward
    return {
        # attention: weights stored pre-transposed, i.e. y = x @ W + b
        "wq": n(ks[0], (D, D)), "wk": n(ks[1], (D, D)), "wv": n(ks[2], (D, D)),
        "bq": jnp.zeros((1, D), jnp.float32),
        "bk": jnp.zeros((1, D), jnp.float32),
        "bv": jnp.zeros((1, D), jnp.float32),
        "wo": n(ks[3], (D, D)), "bo": jnp.zeros((1, D), jnp.float32),
        # layer norms
        "ln1_g": jnp.ones((1, D), jnp.float32), "ln1_b": jnp.zeros((1, D), jnp.float32),
        "ln2_g": jnp.ones((1, D), jnp.float32), "ln2_b": jnp.zeros((1, D), jnp.float32),
        # feed-forward
        "w1": n(ks[4], (D, F)), "fb1": jnp.zeros((1, F), jnp.float32),
        "w2": n(ks[5], (F, D)), "fb2": jnp.zeros((1, D), jnp.float32),
    }


if __name__ == "__main__":
    S, B, D = 8, 2, 32          # seq, batch, d_model (small demo shapes)
    NHEAD, DFF, NUM_LAYERS = 4, 64, 2

    key = jax.random.PRNGKey(0)
    k_src, k_par = jax.random.split(key)
    src = jax.random.normal(k_src, (S, B, D), jnp.float32)
    params = init_params(k_par, D, DFF)

    out = transformer_encoder_wrapper(src, params, NUM_LAYERS, NHEAD)
    out = jax.block_until_ready(out)
    assert out.shape == (S, B, D) and out.dtype == jnp.float32
    assert bool(jnp.all(jnp.isfinite(out)))
    print("KERNEL_OK")
</pallas_src>

<mosaic_0001>
module attributes {stable_mosaic.version = 11 : i64} {
  func.func @fused_encoder_kernel(%arg0: i32, %arg1: i32, %arg2: memref<1x8x32xf32, #tpu.memory_space<vmem>>, %arg3: memref<4x32x8xbf16, #tpu.memory_space<vmem>>, %arg4: memref<4x32x8xbf16, #tpu.memory_space<vmem>>, %arg5: memref<4x32x8xbf16, #tpu.memory_space<vmem>>, %arg6: memref<4x1x8xf32, #tpu.memory_space<vmem>>, %arg7: memref<4x1x8xf32, #tpu.memory_space<vmem>>, %arg8: memref<4x1x8xf32, #tpu.memory_space<vmem>>, %arg9: memref<4x8x32xbf16, #tpu.memory_space<vmem>>, %arg10: memref<1x32xf32, #tpu.memory_space<vmem>>, %arg11: memref<1x32xf32, #tpu.memory_space<vmem>>, %arg12: memref<1x32xf32, #tpu.memory_space<vmem>>, %arg13: memref<32x64xbf16, #tpu.memory_space<vmem>>, %arg14: memref<1x64xf32, #tpu.memory_space<vmem>>, %arg15: memref<64x32xbf16, #tpu.memory_space<vmem>>, %arg16: memref<1x32xf32, #tpu.memory_space<vmem>>, %arg17: memref<1x32xf32, #tpu.memory_space<vmem>>, %arg18: memref<1x32xf32, #tpu.memory_space<vmem>>, %arg19: memref<1x8x32xf32, #tpu.memory_space<vmem>>) attributes {dimension_semantics = [#tpu.dimension_semantics<parallel>, #tpu.dimension_semantics<arbitrary>], iteration_bounds = array<i64: 2, 2>, scalar_prefetch = 0 : i64, scratch_operands = 0 : i64, tpu.core_type = #tpu.core_type<tc>, window_params = [{transform_indices = @transform_0, window_bounds = array<i64: 1, 8, 32>}, {pipeline_mode = #tpu.pipeline_mode<synchronous>, transform_indices = @transform_1, window_bounds = array<i64: 4, 32, 8>}, {pipeline_mode = #tpu.pipeline_mode<synchronous>, transform_indices = @transform_2, window_bounds = array<i64: 4, 32, 8>}, {pipeline_mode = #tpu.pipeline_mode<synchronous>, transform_indices = @transform_3, window_bounds = array<i64: 4, 32, 8>}, {pipeline_mode = #tpu.pipeline_mode<synchronous>, transform_indices = @transform_4, window_bounds = array<i64: 4, 1, 8>}, {pipeline_mode = #tpu.pipeline_mode<synchronous>, transform_indices = @transform_5, window_bounds = array<i64: 4, 1, 8>}, {pipeline_mode = #tpu.pipeline_mode<synchronous>, transform_indices = @transform_6, window_bounds = array<i64: 4, 1, 8>}, {pipeline_mode = #tpu.pipeline_mode<synchronous>, transform_indices = @transform_7, window_bounds = array<i64: 4, 8, 32>}, {pipeline_mode = #tpu.pipeline_mode<synchronous>, transform_indices = @transform_8, window_bounds = array<i64: 1, 32>}, {pipeline_mode = #tpu.pipeline_mode<synchronous>, transform_indices = @transform_9, window_bounds = array<i64: 1, 32>}, {pipeline_mode = #tpu.pipeline_mode<synchronous>, transform_indices = @transform_10, window_bounds = array<i64: 1, 32>}, {pipeline_mode = #tpu.pipeline_mode<synchronous>, transform_indices = @transform_11, window_bounds = array<i64: 32, 64>}, {pipeline_mode = #tpu.pipeline_mode<synchronous>, transform_indices = @transform_12, window_bounds = array<i64: 1, 64>}, {pipeline_mode = #tpu.pipeline_mode<synchronous>, transform_indices = @transform_13, window_bounds = array<i64: 64, 32>}, {pipeline_mode = #tpu.pipeline_mode<synchronous>, transform_indices = @transform_14, window_bounds = array<i64: 1, 32>}, {pipeline_mode = #tpu.pipeline_mode<synchronous>, transform_indices = @transform_15, window_bounds = array<i64: 1, 32>}, {pipeline_mode = #tpu.pipeline_mode<synchronous>, transform_indices = @transform_16, window_bounds = array<i64: 1, 32>}, {transform_indices = @transform_17, window_bounds = array<i64: 1, 8, 32>}]} {
    %c0_i32 = arith.constant 0 : i32
    %0 = arith.cmpi eq, %arg1, %c0_i32 : i32
    %1 = arith.extui %0 : i1 to i32
    %c0_i32_0 = arith.constant 0 : i32
    %2 = arith.cmpi ne, %1, %c0_i32_0 : i32
    scf.if %2 {
      %c0_66 = arith.constant 0 : index
      %c0_67 = arith.constant 0 : index
      %c0_68 = arith.constant 0 : index
      %113 = vector.load %arg2[%c0_66, %c0_67, %c0_68] : memref<1x8x32xf32, #tpu.memory_space<vmem>>, vector<1x8x32xf32>
      %114 = vector.shape_cast %113 : vector<1x8x32xf32> to vector<8x32xf32>
      %c0_69 = arith.constant 0 : index
      %c0_70 = arith.constant 0 : index
      %c0_71 = arith.constant 0 : index
      %115 = vector.load %arg19[%c0_69, %c0_70, %c0_71] : memref<1x8x32xf32, #tpu.memory_space<vmem>>, vector<1x8x32xf32>
      %116 = vector.shape_cast %115 : vector<1x8x32xf32> to vector<8x32xf32>
      %117 = vector.shape_cast %114 : vector<8x32xf32> to vector<1x8x32xf32>
      tpu.vector_store %arg19[%c0_69, %c0_70, %c0_71], %117 {strides = array<i32>} : memref<1x8x32xf32, #tpu.memory_space<vmem>>, vector<1x8x32xf32>,
    } else {
    }
    %c0 = arith.constant 0 : index
    %c0_1 = arith.constant 0 : index
    %c0_2 = arith.constant 0 : index
    %3 = vector.load %arg19[%c0, %c0_1, %c0_2] : memref<1x8x32xf32, #tpu.memory_space<vmem>>, vector<1x8x32xf32>
    %4 = vector.shape_cast %3 : vector<1x8x32xf32> to vector<8x32xf32>
    %5 = arith.truncf %4 : vector<8x32xf32> to vector<8x32xbf16>
    %6 = vector.shape_cast %5 : vector<8x32xbf16> to vector<1x8x32xbf16>
    %7 = vector.broadcast %6 : vector<1x8x32xbf16> to vector<4x8x32xbf16>
    %c0_3 = arith.constant 0 : index
    %c0_4 = arith.constant 0 : index
    %c0_5 = arith.constant 0 : index
    %8 = vector.load %arg3[%c0_3, %c0_4, %c0_5] : memref<4x32x8xbf16, #tpu.memory_space<vmem>>, vector<4x32x8xbf16>
    "tpu.trace_start"() <{level = 10 : i32, message = "hsd,hdf->hsf"}> : () -> ()
    %cst = arith.constant dense<0.000000e+00> : vector<4x8x8xf32>
    %9 = tpu.matmul %7, %8, %cst {dimension_numbers = #tpu.dot_dimension_numbers<[2], [1], [1], [2], [0, 0, 0, 1, 1, 2], [0], [0]>} : vector<4x8x32xbf16>, vector<4x32x8xbf16>, vector<4x8x8xf32> -> vector<4x8x8xf32>
    "tpu.trace_stop"() : () -> ()
    %c0_6 = arith.constant 0 : index
    %c0_7 = arith.constant 0 : index
    %c0_8 = arith.constant 0 : index
    %10 = vector.load %arg6[%c0_6, %c0_7, %c0_8] : memref<4x1x8xf32, #tpu.memory_space<vmem>>, vector<4x1x8xf32>
    %11 = vector.broadcast %10 : vector<4x1x8xf32> to vector<4x8x8xf32>
    %12 = arith.addf %9, %11 : vector<4x8x8xf32>
    %c0_9 = arith.constant 0 : index
    %c0_10 = arith.constant 0 : index
    %c0_11 = arith.constant 0 : index
    %13 = vector.load %arg4[%c0_9, %c0_10, %c0_11] : memref<4x32x8xbf16, #tpu.memory_space<vmem>>, vector<4x32x8xbf16>
    "tpu.trace_start"() <{level = 10 : i32, message = "hsd,hdf->hsf"}> : () -> ()
    %cst_12 = arith.constant dense<0.000000e+00> : vector<4x8x8xf32>
    %14 = tpu.matmul %7, %13, %cst_12 {dimension_numbers = #tpu.dot_dimension_numbers<[2], [1], [1], [2], [0, 0, 0, 1, 1, 2], [0], [0]>} : vector<4x8x32xbf16>, vector<4x32x8xbf16>, vector<4x8x8xf32> -> vector<4x8x8xf32>
    "tpu.trace_stop"() : () -> ()
    %c0_13 = arith.constant 0 : index
    %c0_14 = arith.constant 0 : index
    %c0_15 = arith.constant 0 : index
    %15 = vector.load %arg7[%c0_13, %c0_14, %c0_15] : memref<4x1x8xf32, #tpu.memory_space<vmem>>, vector<4x1x8xf32>
    %16 = vector.broadcast %15 : vector<4x1x8xf32> to vector<4x8x8xf32>
    %17 = arith.addf %14, %16 : vector<4x8x8xf32>
    %c0_16 = arith.constant 0 : index
    %c0_17 = arith.constant 0 : index
    %c0_18 = arith.constant 0 : index
    %18 = vector.load %arg5[%c0_16, %c0_17, %c0_18] : memref<4x32x8xbf16, #tpu.memory_space<vmem>>, vector<4x32x8xbf16>
    "tpu.trace_start"() <{level = 10 : i32, message = "hsd,hdf->hsf"}> : () -> ()
    %cst_19 = arith.constant dense<0.000000e+00> : vector<4x8x8xf32>
    %19 = tpu.matmul %7, %18, %cst_19 {dimension_numbers = #tpu.dot_dimension_numbers<[2], [1], [1], [2], [0, 0, 0, 1, 1, 2], [0], [0]>} : vector<4x8x32xbf16>, vector<4x32x8xbf16>, vector<4x8x8xf32> -> vector<4x8x8xf32>
    "tpu.trace_stop"() : () -> ()
    %c0_20 = arith.constant 0 : index
    %c0_21 = arith.constant 0 : index
    %c0_22 = arith.constant 0 : index
    %20 = vector.load %arg8[%c0_20, %c0_21, %c0_22] : memref<4x1x8xf32, #tpu.memory_space<vmem>>, vector<4x1x8xf32>
    %21 = vector.broadcast %20 : vector<4x1x8xf32> to vector<4x8x8xf32>
    %22 = arith.addf %19, %21 : vector<4x8x8xf32>
    %23 = arith.truncf %12 : vector<4x8x8xf32> to vector<4x8x8xbf16>
    %24 = arith.truncf %17 : vector<4x8x8xf32> to vector<4x8x8xbf16>
    "tpu.trace_start"() <{level = 10 : i32, message = "hqf,hkf->hqk"}> : () -> ()
    %cst_23 = arith.constant dense<0.000000e+00> : vector<4x8x8xf32>
    %25 = tpu.matmul %23, %24, %cst_23 {dimension_numbers = #tpu.dot_dimension_numbers<[2], [2], [1], [1], [0, 0, 0, 1, 1, 1], [0], [0]>} : vector<4x8x8xbf16>, vector<4x8x8xbf16>, vector<4x8x8xf32> -> vector<4x8x8xf32>
    "tpu.trace_stop"() : () -> ()
    %cst_24 = arith.constant dense<0xFF800000> : vector<4x8xf32>
    %26 = vector.multi_reduction <maximumf>, %25, %cst_24 [2] : vector<4x8x8xf32> to vector<4x8xf32>
    %27 = vector.shape_cast %26 : vector<4x8xf32> to vector<4x8x1xf32>
    %28 = vector.broadcast %27 : vector<4x8x1xf32> to vector<4x8x8xf32>
    %29 = arith.subf %25, %28 : vector<4x8x8xf32>
    %30 = math.exp %29 : vector<4x8x8xf32>
    %cst_25 = arith.constant dense<0.000000e+00> : vector<4x8xf32>
    %31 = vector.multi_reduction <add>, %30, %cst_25 [2] : vector<4x8x8xf32> to vector<4x8xf32>
    %32 = vector.shape_cast %31 : vector<4x8xf32> to vector<4x8x1xf32>
    %33 = tpu.reciprocal %32 {approx = true} : vector<4x8x1xf32> -> vector<4x8x1xf32>
    %34 = vector.broadcast %33 : vector<4x8x1xf32> to vector<4x8x8xf32>
    %35 = arith.mulf %30, %34 : vector<4x8x8xf32>
    %36 = arith.truncf %35 : vector<4x8x8xf32> to vector<4x8x8xbf16>
    %37 = arith.truncf %22 : vector<4x8x8xf32> to vector<4x8x8xbf16>
    "tpu.trace_start"() <{level = 10 : i32, message = "hqk,hkf->hqf"}> : () -> ()
    %cst_26 = arith.constant dense<0.000000e+00> : vector<4x8x8xf32>
    %38 = tpu.matmul %36, %37, %cst_26 {dimension_numbers = #tpu.dot_dimension_numbers<[2], [1], [1], [2], [0, 0, 0, 1, 1, 2], [0], [0]>} : vector<4x8x8xbf16>, vector<4x8x8xbf16>, vector<4x8x8xf32> -> vector<4x8x8xf32>
    "tpu.trace_stop"() : () -> ()
    %39 = arith.truncf %38 : vector<4x8x8xf32> to vector<4x8x8xbf16>
    %c0_27 = arith.constant 0 : index
    %c0_28 = arith.constant 0 : index
    %c0_29 = arith.constant 0 : index
    %40 = vector.load %arg9[%c0_27, %c0_28, %c0_29] : memref<4x8x32xbf16, #tpu.memory_space<vmem>>, vector<4x8x32xbf16>
    "tpu.trace_start"() <{level = 10 : i32, message = "hqf,hfd->hqd"}> : () -> ()
    %cst_30 = arith.constant dense<0.000000e+00> : vector<4x8x32xf32>
    %41 = tpu.matmul %39, %40, %cst_30 {dimension_numbers = #tpu.dot_dimension_numbers<[2], [1], [1], [2], [0, 0, 0, 1, 1, 2], [0], [0]>} : vector<4x8x8xbf16>, vector<4x8x32xbf16>, vector<4x8x32xf32> -> vector<4x8x32xf32>
    "tpu.trace_stop"() : () -> ()
    %cst_31 = arith.constant dense<0.000000e+00> : vector<8x32xf32>
    %42 = vector.multi_reduction <add>, %41, %cst_31 [0] : vector<4x8x32xf32> to vector<8x32xf32>
    %c0_32 = arith.constant 0 : index
    %c0_33 = arith.constant 0 : index
    %43 = vector.load %arg10[%c0_32, %c0_33] : memref<1x32xf32, #tpu.memory_space<vmem>>, vector<1x32xf32>
    %44 = vector.broadcast %43 : vector<1x32xf32> to vector<8x32xf32>
    %45 = arith.addf %42, %44 : vector<8x32xf32>
    %46 = arith.addf %4, %45 : vector<8x32xf32>
    %c0_34 = arith.constant 0 : index
    %c0_35 = arith.constant 0 : index
    %47 = vector.load %arg11[%c0_34, %c0_35] : memref<1x32xf32, #tpu.memory_space<vmem>>, vector<1x32xf32>
    %c0_36 = arith.constant 0 : index
    %c0_37 = arith.constant 0 : index
    %48 = vector.load %arg12[%c0_36, %c0_37] : memref<1x32xf32, #tpu.memory_space<vmem>>, vector<1x32xf32>
    %cst_38 = arith.constant dense<0.000000e+00> : vector<8xf32>
    %49 = vector.multi_reduction <add>, %46, %cst_38 [1] : vector<8x32xf32> to vector<8xf32>
    %50 = vector.shape_cast %49 : vector<8xf32> to vector<8x1xf32>
    %cst_39 = arith.constant 3.200000e+01 : f32
    %51 = vector.broadcast %cst_39 : f32 to vector<8x1xf32>
    %52 = arith.divf %50, %51 : vector<8x1xf32>
    %53 = vector.broadcast %52 : vector<8x1xf32> to vector<8x32xf32>
    %54 = arith.subf %46, %53 : vector<8x32xf32>
    %55 = arith.mulf %54, %54 : vector<8x32xf32>
    %cst_40 = arith.constant dense<0.000000e+00> : vector<8xf32>
    %56 = vector.multi_reduction <add>, %55, %cst_40 [1] : vector<8x32xf32> to vector<8xf32>
    %57 = vector.shape_cast %56 : vector<8xf32> to vector<8x1xf32>
    %cst_41 = arith.constant 3.200000e+01 : f32
    %58 = vector.broadcast %cst_41 : f32 to vector<8x1xf32>
    %59 = arith.divf %57, %58 : vector<8x1xf32>
    %60 = vector.broadcast %52 : vector<8x1xf32> to vector<8x32xf32>
    %61 = arith.subf %46, %60 : vector<8x32xf32>
    %cst_42 = arith.constant 9.99999974E-6 : f32
    %62 = vector.broadcast %cst_42 : f32 to vector<8x1xf32>
    %63 = arith.addf %59, %62 : vector<8x1xf32>
    %64 = math.rsqrt %63 : vector<8x1xf32>
    %65 = vector.broadcast %64 : vector<8x1xf32> to vector<8x32xf32>
    %66 = arith.mulf %61, %65 : vector<8x32xf32>
    %67 = vector.broadcast %47 : vector<1x32xf32> to vector<8x32xf32>
    %68 = arith.mulf %66, %67 : vector<8x32xf32>
    %69 = vector.broadcast %48 : vector<1x32xf32> to vector<8x32xf32>
    %70 = arith.addf %68, %69 : vector<8x32xf32>
    %71 = arith.truncf %70 : vector<8x32xf32> to vector<8x32xbf16>
    %c0_43 = arith.constant 0 : index
    %c0_44 = arith.constant 0 : index
    %72 = vector.load %arg13[%c0_43, %c0_44] : memref<32x64xbf16, #tpu.memory_space<vmem>>, vector<32x64xbf16>
    %cst_45 = arith.constant dense<0.000000e+00> : vector<8x64xf32>
    %73 = tpu.matmul %71, %72, %cst_45 {dimension_numbers = #tpu.dot_dimension_numbers<[1], [0], [0], [1], [0, 0, 1, 1], [], []>} : vector<8x32xbf16>, vector<32x64xbf16>, vector<8x64xf32> -> vector<8x64xf32>
    %c0_46 = arith.constant 0 : index
    %c0_47 = arith.constant 0 : index
    %74 = vector.load %arg14[%c0_46, %c0_47] : memref<1x64xf32, #tpu.memory_space<vmem>>, vector<1x64xf32>
    %75 = vector.broadcast %74 : vector<1x64xf32> to vector<8x64xf32>
    %76 = arith.addf %73, %75 : vector<8x64xf32>
    %cst_48 = arith.constant 0.000000e+00 : f32
    %77 = vector.broadcast %cst_48 : f32 to vector<8x64xf32>
    %78 = arith.maximumf %76, %77 : vector<8x64xf32>
    %79 = arith.truncf %78 : vector<8x64xf32> to vector<8x64xbf16>
    %c0_49 = arith.constant 0 : index
    %c0_50 = arith.constant 0 : index
    %80 = vector.load %arg15[%c0_49, %c0_50] : memref<64x32xbf16, #tpu.memory_space<vmem>>, vector<64x32xbf16>
    %cst_51 = arith.constant dense<0.000000e+00> : vector<8x32xf32>
    %81 = tpu.matmul %79, %80, %cst_51 {dimension_numbers = #tpu.dot_dimension_numbers<[1], [0], [0], [1], [0, 0, 1, 1], [], []>} : vector<8x64xbf16>, vector<64x32xbf16>, vector<8x32xf32> -> vector<8x32xf32>
    %c0_52 = arith.constant 0 : index
    %c0_53 = arith.constant 0 : index
    %82 = vector.load %arg16[%c0_52, %c0_53] : memref<1x32xf32, #tpu.memory_space<vmem>>, vector<1x32xf32>
    %83 = vector.broadcast %82 : vector<1x32xf32> to vector<8x32xf32>
    %84 = arith.addf %81, %83 : vector<8x32xf32>
    %85 = arith.addf %70, %84 : vector<8x32xf32>
    %c0_54 = arith.constant 0 : index
    %c0_55 = arith.constant 0 : index
    %86 = vector.load %arg17[%c0_54, %c0_55] : memref<1x32xf32, #tpu.memory_space<vmem>>, vector<1x32xf32>
    %c0_56 = arith.constant 0 : index
    %c0_57 = arith.constant 0 : index
    %87 = vector.load %arg18[%c0_56, %c0_57] : memref<1x32xf32, #tpu.memory_space<vmem>>, vector<1x32xf32>
    %cst_58 = arith.constant dense<0.000000e+00> : vector<8xf32>
    %88 = vector.multi_reduction <add>, %85, %cst_58 [1] : vector<8x32xf32> to vector<8xf32>
    %89 = vector.shape_cast %88 : vector<8xf32> to vector<8x1xf32>
    %cst_59 = arith.constant 3.200000e+01 : f32
    %90 = vector.broadcast %cst_59 : f32 to vector<8x1xf32>
    %91 = arith.divf %89, %90 : vector<8x1xf32>
    %92 = vector.broadcast %91 : vector<8x1xf32> to vector<8x32xf32>
    %93 = arith.subf %85, %92 : vector<8x32xf32>
    %94 = arith.mulf %93, %93 : vector<8x32xf32>
    %cst_60 = arith.constant dense<0.000000e+00> : vector<8xf32>
    %95 = vector.multi_reduction <add>, %94, %cst_60 [1] : vector<8x32xf32> to vector<8xf32>
    %96 = vector.shape_cast %95 : vector<8xf32> to vector<8x1xf32>
    %cst_61 = arith.constant 3.200000e+01 : f32
    %97 = vector.broadcast %cst_61 : f32 to vector<8x1xf32>
    %98 = arith.divf %96, %97 : vector<8x1xf32>
    %99 = vector.broadcast %91 : vector<8x1xf32> to vector<8x32xf32>
    %100 = arith.subf %85, %99 : vector<8x32xf32>
    %cst_62 = arith.constant 9.99999974E-6 : f32
    %101 = vector.broadcast %cst_62 : f32 to vector<8x1xf32>
    %102 = arith.addf %98, %101 : vector<8x1xf32>
    %103 = math.rsqrt %102 : vector<8x1xf32>
    %104 = vector.broadcast %103 : vector<8x1xf32> to vector<8x32xf32>
    %105 = arith.mulf %100, %104 : vector<8x32xf32>
    %106 = vector.broadcast %86 : vector<1x32xf32> to vector<8x32xf32>
    %107 = arith.mulf %105, %106 : vector<8x32xf32>
    %108 = vector.broadcast %87 : vector<1x32xf32> to vector<8x32xf32>
    %109 = arith.addf %107, %108 : vector<8x32xf32>
    %c0_63 = arith.constant 0 : index
    %c0_64 = arith.constant 0 : index
    %c0_65 = arith.constant 0 : index
    %110 = vector.load %arg19[%c0_63, %c0_64, %c0_65] : memref<1x8x32xf32, #tpu.memory_space<vmem>>, vector<1x8x32xf32>
    %111 = vector.shape_cast %110 : vector<1x8x32xf32> to vector<8x32xf32>
    %112 = vector.shape_cast %109 : vector<8x32xf32> to vector<1x8x32xf32>
    tpu.vector_store %arg19[%c0_63, %c0_64, %c0_65], %112 {strides = array<i32>} : memref<1x8x32xf32, #tpu.memory_space<vmem>>, vector<1x8x32xf32>,
    return
  }
  func.func @transform_0(%arg0: i32, %arg1: i32) -> (i32, i32, i32) {
    %c0_i32 = arith.constant 0 : i32
    %c0_i32_0 = arith.constant 0 : i32
    %c0_i32_1 = arith.constant 0 : i32
    return %arg0, %c0_i32, %c0_i32_0 : i32, i32, i32
  }
  func.func @transform_1(%arg0: i32, %arg1: i32) -> (i32, i32, i32) {
    %c0_i32 = arith.constant 0 : i32
    %c0_i32_0 = arith.constant 0 : i32
    %c0_i32_1 = arith.constant 0 : i32
    %c0_i32_2 = arith.constant 0 : i32
    return %c0_i32, %c0_i32_0, %c0_i32_1 : i32, i32, i32
  }
  func.func @transform_2(%arg0: i32, %arg1: i32) -> (i32, i32, i32) {
    %c0_i32 = arith.constant 0 : i32
    %c0_i32_0 = arith.constant 0 : i32
    %c0_i32_1 = arith.constant 0 : i32
    %c0_i32_2 = arith.constant 0 : i32
    return %c0_i32, %c0_i32_0, %c0_i32_1 : i32, i32, i32
  }
  func.func @transform_3(%arg0: i32, %arg1: i32) -> (i32, i32, i32) {
    %c0_i32 = arith.constant 0 : i32
    %c0_i32_0 = arith.constant 0 : i32
    %c0_i32_1 = arith.constant 0 : i32
    %c0_i32_2 = arith.constant 0 : i32
    return %c0_i32, %c0_i32_0, %c0_i32_1 : i32, i32, i32
  }
  func.func @transform_4(%arg0: i32, %arg1: i32) -> (i32, i32, i32) {
    %c0_i32 = arith.constant 0 : i32
    %c0_i32_0 = arith.constant 0 : i32
    %c0_i32_1 = arith.constant 0 : i32
    %c0_i32_2 = arith.constant 0 : i32
    return %c0_i32, %c0_i32_0, %c0_i32_1 : i32, i32, i32
  }
  func.func @transform_5(%arg0: i32, %arg1: i32) -> (i32, i32, i32) {
    %c0_i32 = arith.constant 0 : i32
    %c0_i32_0 = arith.constant 0 : i32
    %c0_i32_1 = arith.constant 0 : i32
    %c0_i32_2 = arith.constant 0 : i32
    return %c0_i32, %c0_i32_0, %c0_i32_1 : i32, i32, i32
  }
  func.func @transform_6(%arg0: i32, %arg1: i32) -> (i32, i32, i32) {
    %c0_i32 = arith.constant 0 : i32
    %c0_i32_0 = arith.constant 0 : i32
    %c0_i32_1 = arith.constant 0 : i32
    %c0_i32_2 = arith.constant 0 : i32
    return %c0_i32, %c0_i32_0, %c0_i32_1 : i32, i32, i32
  }
  func.func @transform_7(%arg0: i32, %arg1: i32) -> (i32, i32, i32) {
    %c0_i32 = arith.constant 0 : i32
    %c0_i32_0 = arith.constant 0 : i32
    %c0_i32_1 = arith.constant 0 : i32
    %c0_i32_2 = arith.constant 0 : i32
    return %c0_i32, %c0_i32_0, %c0_i32_1 : i32, i32, i32
  }
  func.func @transform_8(%arg0: i32, %arg1: i32) -> (i32, i32) {
    %c0_i32 = arith.constant 0 : i32
    %c0_i32_0 = arith.constant 0 : i32
    %c0_i32_1 = arith.constant 0 : i32
    return %c0_i32, %c0_i32_0 : i32, i32
  }
  func.func @transform_9(%arg0: i32, %arg1: i32) -> (i32, i32) {
    %c0_i32 = arith.constant 0 : i32
    %c0_i32_0 = arith.constant 0 : i32
    %c0_i32_1 = arith.constant 0 : i32
    return %c0_i32, %c0_i32_0 : i32, i32
  }
  func.func @transform_10(%arg0: i32, %arg1: i32) -> (i32, i32) {
    %c0_i32 = arith.constant 0 : i32
    %c0_i32_0 = arith.constant 0 : i32
    %c0_i32_1 = arith.constant 0 : i32
    return %c0_i32, %c0_i32_0 : i32, i32
  }
  func.func @transform_11(%arg0: i32, %arg1: i32) -> (i32, i32) {
    %c0_i32 = arith.constant 0 : i32
    %c0_i32_0 = arith.constant 0 : i32
    %c0_i32_1 = arith.constant 0 : i32
    return %c0_i32, %c0_i32_0 : i32, i32
  }
  func.func @transform_12(%arg0: i32, %arg1: i32) -> (i32, i32) {
    %c0_i32 = arith.constant 0 : i32
    %c0_i32_0 = arith.constant 0 : i32
    %c0_i32_1 = arith.constant 0 : i32
    return %c0_i32, %c0_i32_0 : i32, i32
  }
  func.func @transform_13(%arg0: i32, %arg1: i32) -> (i32, i32) {
    %c0_i32 = arith.constant 0 : i32
    %c0_i32_0 = arith.constant 0 : i32
    %c0_i32_1 = arith.constant 0 : i32
    return %c0_i32, %c0_i32_0 : i32, i32
  }
  func.func @transform_14(%arg0: i32, %arg1: i32) -> (i32, i32) {
    %c0_i32 = arith.constant 0 : i32
    %c0_i32_0 = arith.constant 0 : i32
    %c0_i32_1 = arith.constant 0 : i32
    return %c0_i32, %c0_i32_0 : i32, i32
  }
  func.func @transform_15(%arg0: i32, %arg1: i32) -> (i32, i32) {
    %c0_i32 = arith.constant 0 : i32
    %c0_i32_0 = arith.constant 0 : i32
    %c0_i32_1 = arith.constant 0 : i32
    return %c0_i32, %c0_i32_0 : i32, i32
  }
  func.func @transform_16(%arg0: i32, %arg1: i32) -> (i32, i32) {
    %c0_i32 = arith.constant 0 : i32
    %c0_i32_0 = arith.constant 0 : i32
    %c0_i32_1 = arith.constant 0 : i32
    return %c0_i32, %c0_i32_0 : i32, i32
  }
  func.func @transform_17(%arg0: i32, %arg1: i32) -> (i32, i32, i32) {
    %c0_i32 = arith.constant 0 : i32
    %c0_i32_0 = arith.constant 0 : i32
    %c0_i32_1 = arith.constant 0 : i32
    return %arg0, %c0_i32, %c0_i32_0 : i32, i32, i32
  }
}

</mosaic_0001>

<llo_original>
// kernel: tpu_custom_call.1
$region0: #{tpu_custom_call.1}
  #allocation0 [shape = 'u32[]', space=smem, size = 0x4, offset = 0x4, fixed_abs, tag = 'smem constant byte address 0x4 - core index']
  #allocation1 [shape = 'u32[144,128]{1,0:T(1,128)}', space=vmem, size = 0x12000, scoped, tag = 'internal scratch']
  %s0 = inlined_call_operand.vmem [shape: f32[2,8,32], index: 0, kind: input, shape index: {}]
  %s1 = inlined_call_operand.vmem [shape: bf16[4,32,8], index: 1, kind: input, shape index: {}]
  %s2 = inlined_call_operand.vmem [shape: bf16[4,32,8], index: 2, kind: input, shape index: {}]
  %s3 = inlined_call_operand.vmem [shape: bf16[4,32,8], index: 3, kind: input, shape index: {}]
  %s4 = inlined_call_operand.vmem [shape: f32[4,1,8], index: 4, kind: input, shape index: {}]
  %s5 = inlined_call_operand.vmem [shape: f32[4,1,8], index: 5, kind: input, shape index: {}]
  %s6 = inlined_call_operand.vmem [shape: f32[4,1,8], index: 6, kind: input, shape index: {}]
  %s7 = inlined_call_operand.vmem [shape: bf16[4,8,32], index: 7, kind: input, shape index: {}]
  %s8 = inlined_call_operand.vmem [shape: f32[1,32], index: 8, kind: input, shape index: {}]
  %s9 = inlined_call_operand.vmem [shape: f32[1,32], index: 9, kind: input, shape index: {}]
  %s10 = inlined_call_operand.vmem [shape: f32[1,32], index: 10, kind: input, shape index: {}]
  %s11 = inlined_call_operand.vmem [shape: bf16[32,64], index: 11, kind: input, shape index: {}]
  %s12 = inlined_call_operand.vmem [shape: f32[1,64], index: 12, kind: input, shape index: {}]
  %s13 = inlined_call_operand.vmem [shape: bf16[64,32], index: 13, kind: input, shape index: {}]
  %s14 = inlined_call_operand.vmem [shape: f32[1,32], index: 14, kind: input, shape index: {}]
  %s15 = inlined_call_operand.vmem [shape: f32[1,32], index: 15, kind: input, shape index: {}]
  %s16 = inlined_call_operand.vmem [shape: f32[1,32], index: 16, kind: input, shape index: {}]
  %s17 = inlined_call_operand.hbm [shape: f32[2,8,32], index: 17, kind: output, shape index: {}]
  %s18 = sld [smem:[#allocation0]]
  $region105: #{tpu_custom_call.1} parent=0
    _
  %s20 = ssub.s32 1, %s18
  %s21 = scalar_select 0, %s20, %s18
  $region1: #{tpu_custom_call.1} parent=0
    #allocation2 [shape = 'u8[8192]{0}', space=vmem, size = 0x2000, scoped, tag = 'output window, operand 0']
    #allocation3 [shape = 's32[2]{0}', space=sflag, size = 0x8, scoped, tag = 'scoped memory for tpu_custom_call.1']
    %22 = vsyncpa [#allocation3], 0
    %s23 = scalar_lea.sflag [#allocation3], 1
    %24 = vsyncpa %s23, 0
    loop: start=0, step=1, limit=6
    $region2: #{tpu_custom_call.1} parent=1 // loop_pre_header
      _
    $region3: #{tpu_custom_call.1} parent=1 // loop_header
      %s26 = sphi 0, %s30
      %p27 = scmp.ge.s32.totalorder %s26, 6
      %s33 = sphi 0, %s45
      %s34 = sphi 0, %s41
      %s35 = sphi 0, %s33
      %s36 = sphi 0, %s34
      %s37 = sphi 0, %s35
      %s38 = sphi 0, %s36
      %s48 = sphi 0, %s50
      %s51 = sphi 0, %s48
      %s52 = sphi 0, %s51
      %s68 = sphi 0, %s52
      %s72 = sphi 0, %s72
      %s74 = sphi 0, %s72
      %s75 = sphi 0, %s74
      %s89 = sphi 0, %s75
      %s93 = sphi 0, %s93
      %s95 = sphi 0, %s93
      %s96 = sphi 0, %s95
      %s110 = sphi 0, %s96
      %s114 = sphi 0, %s114
      %s116 = sphi 0, %s114
      %s117 = sphi 0, %s116
      %s131 = sphi 0, %s117
      %s135 = sphi 0, %s135
      %s137 = sphi 0, %s135
      %s138 = sphi 0, %s137
      %s152 = sphi 0, %s138
      %s156 = sphi 0, %s156
      %s158 = sphi 0, %s156
      %s159 = sphi 0, %s158
      %s173 = sphi 0, %s159
      %s177 = sphi 0, %s177
      %s179 = sphi 0, %s177
      %s180 = sphi 0, %s179
      %s194 = sphi 0, %s180
      %s198 = sphi 0, %s198
      %s200 = sphi 0, %s198
      %s201 = sphi 0, %s200
      %s215 = sphi 0, %s201
      %s219 = sphi 0, %s219
      %s221 = sphi 0, %s219
      %s222 = sphi 0, %s221
      %s236 = sphi 0, %s222
      %s240 = sphi 0, %s240
      %s242 = sphi 0, %s240
      %s243 = sphi 0, %s242
      %s257 = sphi 0, %s243
      %s261 = sphi 0, %s261
      %s263 = sphi 0, %s261
      %s264 = sphi 0, %s263
      %s278 = sphi 0, %s264
      %s282 = sphi 0, %s282
      %s284 = sphi 0, %s282
      %s285 = sphi 0, %s284
      %s299 = sphi 0, %s285
      %s303 = sphi 0, %s303
      %s305 = sphi 0, %s303
      %s306 = sphi 0, %s305
      %s320 = sphi 0, %s306
      %s324 = sphi 0, %s324
      %s326 = sphi 0, %s324
      %s327 = sphi 0, %s326
      %s341 = sphi 0, %s327
      %s345 = sphi 0, %s345
      %s347 = sphi 0, %s345
      %s348 = sphi 0, %s347
      %s362 = sphi 0, %s348
      %s366 = sphi 0, %s366
      %s368 = sphi 0, %s366
      %s369 = sphi 0, %s368
      %s383 = sphi 0, %s369
      %s387 = sphi 0, %s387
      %s389 = sphi 0, %s387
      %s390 = sphi 0, %s389
      %s404 = sphi 0, %s390
      %s410 = sphi 0, %s412
      %s413 = sphi 0, %s410
      %s414 = sphi 0, %s413
      %s430 = sphi 0, %s414
    $region4: #{tpu_custom_call.1} parent=1 // loop_header_branch
      %29 = sbr.rel (%p27) target = $region8
    $region5: #{tpu_custom_call.1} parent=1 // loop_body
      %s31 = ssub.s32 %s26, 1
      %s32 = ssub.s32 %s26, 2
      %s39 = sadd.s32 1, %s34
      %p40 = scmp.ge.s32.totalorder %s39, 2
      %s41 = scalar_select %p40, 0, %s39
      %s42 = sadd.s32 1, %s33
      %s43 = scalar_select %p40, %s42, %s33
      %p44 = scmp.ge.s32.totalorder %s43, 2
      %s45 = scalar_select %p44, 0, %s43
      %s46 = ssub.s32 %s33, %s45
      %p47 = scmp.eq.s32.totalorder %s46, 0
      %s49 = sadd.s32 %s48, 1
      %s50 = scalar_select %p47, %s48, %s49
      %p53 = pneg %p47
      %p54 = scmp.eq.s32.totalorder %s26, 3
      %p55 = por %p53, %p54
      %p56 = scmp.ne.s32.totalorder %s48, %s51
      %p57 = scmp.eq.s32.totalorder %s26, 0
      %p58 = por %p56, %p57
      %p59 = scmp.ne.s32.totalorder %s48, %s51
      %p60 = scmp.eq.s32.totalorder %s31, 3
      %p61 = por %p59, %p60
      %p62 = scmp.ne.s32.totalorder %s51, %s52
      %p63 = scmp.eq.s32.totalorder %s31, 0
      %p64 = por %p62, %p63
      %p65 = scmp.ne.s32.totalorder %s51, %s52
      %p66 = scmp.eq.s32.totalorder %s32, 3
      %p67 = por %p65, %p66
      %p69 = scmp.ne.s32.totalorder %s52, %s68
      %p70 = scmp.eq.s32.totalorder %s32, 0
      %p71 = por %p69, %p70
      %s73 = sadd.s32 %s72, 1
      %p76 = scmp.eq.s32.totalorder %s26, 3
      %p77 = scmp.ne.s32.totalorder %s72, %s74
      %p78 = scmp.eq.s32.totalorder %s26, 0
      %p79 = por %p77, %p78
      %p80 = scmp.ne.s32.totalorder %s72, %s74
      %p81 = scmp.eq.s32.totalorder %s31, 3
      %p82 = por %p80, %p81
      %p83 = scmp.ne.s32.totalorder %s74, %s75
      %p84 = scmp.eq.s32.totalorder %s31, 0
      %p85 = por %p83, %p84
      %p86 = scmp.ne.s32.totalorder %s74, %s75
      %p87 = scmp.eq.s32.totalorder %s32, 3
      %p88 = por %p86, %p87
      %p90 = scmp.ne.s32.totalorder %s75, %s89
      %p91 = scmp.eq.s32.totalorder %s32, 0
      %p92 = por %p90, %p91
      %s94 = sadd.s32 %s93, 1
      %p97 = scmp.eq.s32.totalorder %s26, 3
      %p98 = scmp.ne.s32.totalorder %s93, %s95
      %p99 = scmp.eq.s32.totalorder %s26, 0
      %p100 = por %p98, %p99
      %p101 = scmp.ne.s32.totalorder %s93, %s95
      %p102 = scmp.eq.s32.totalorder %s31, 3
      %p103 = por %p101, %p102
      %p104 = scmp.ne.s32.totalorder %s95, %s96
      %p105 = scmp.eq.s32.totalorder %s31, 0
      %p106 = por %p104, %p105
      %p107 = scmp.ne.s32.totalorder %s95, %s96
      %p108 = scmp.eq.s32.totalorder %s32, 3
      %p109 = por %p107, %p108
      %p111 = scmp.ne.s32.totalorder %s96, %s110
      %p112 = scmp.eq.s32.totalorder %s32, 0
      %p113 = por %p111, %p112
      %s115 = sadd.s32 %s114, 1
      %p118 = scmp.eq.s32.totalorder %s26, 3
      %p119 = scmp.ne.s32.totalorder %s114, %s116
      %p120 = scmp.eq.s32.totalorder %s26, 0
      %p121 = por %p119, %p120
      %p122 = scmp.ne.s32.totalorder %s114, %s116
      %p123 = scmp.eq.s32.totalorder %s31, 3
      %p124 = por %p122, %p123
      %p125 = scmp.ne.s32.totalorder %s116, %s117
      %p126 = scmp.eq.s32.totalorder %s31, 0
      %p127 = por %p125, %p126
      %p128 = scmp.ne.s32.totalorder %s116, %s117
      %p129 = scmp.eq.s32.totalorder %s32, 3
      %p130 = por %p128, %p129
      %p132 = scmp.ne.s32.totalorder %s117, %s131
      %p133 = scmp.eq.s32.totalorder %s32, 0
      %p134 = por %p132, %p133
      %s136 = sadd.s32 %s135, 1
      %p139 = scmp.eq.s32.totalorder %s26, 3
      %p140 = scmp.ne.s32.totalorder %s135, %s137
      %p141 = scmp.eq.s32.totalorder %s26, 0
      %p142 = por %p140, %p141
      %p143 = scmp.ne.s32.totalorder %s135, %s137
      %p144 = scmp.eq.s32.totalorder %s31, 3
      %p145 = por %p143, %p144
      %p146 = scmp.ne.s32.totalorder %s137, %s138
      %p147 = scmp.eq.s32.totalorder %s31, 0
      %p148 = por %p146, %p147
      %p149 = scmp.ne.s32.totalorder %s137, %s138
      %p150 = scmp.eq.s32.totalorder %s32, 3
      %p151 = por %p149, %p150
      %p153 = scmp.ne.s32.totalorder %s138, %s152
      %p154 = scmp.eq.s32.totalorder %s32, 0
      %p155 = por %p153, %p154
      %s157 = sadd.s32 %s156, 1
      %p160 = scmp.eq.s32.totalorder %s26, 3
      %p161 = scmp.ne.s32.totalorder %s156, %s158
      %p162 = scmp.eq.s32.totalorder %s26, 0
      %p163 = por %p161, %p162
      %p164 = scmp.ne.s32.totalorder %s156, %s158
      %p165 = scmp.eq.s32.totalorder %s31, 3
      %p166 = por %p164, %p165
      %p167 = scmp.ne.s32.totalorder %s158, %s159
      %p168 = scmp.eq.s32.totalorder %s31, 0
      %p169 = por %p167, %p168
      %p170 = scmp.ne.s32.totalorder %s158, %s159
      %p171 = scmp.eq.s32.totalorder %s32, 3
      %p172 = por %p170, %p171
      %p174 = scmp.ne.s32.totalorder %s159, %s173
      %p175 = scmp.eq.s32.totalorder %s32, 0
      %p176 = por %p174, %p175
      %s178 = sadd.s32 %s177, 1
      %p181 = scmp.eq.s32.totalorder %s26, 3
      %p182 = scmp.ne.s32.totalorder %s177, %s179
      %p183 = scmp.eq.s32.totalorder %s26, 0
      %p184 = por %p182, %p183
      %p185 = scmp.ne.s32.totalorder %s177, %s179
      %p186 = scmp.eq.s32.totalorder %s31, 3
      %p187 = por %p185, %p186
      %p188 = scmp.ne.s32.totalorder %s179, %s180
      %p189 = scmp.eq.s32.totalorder %s31, 0
      %p190 = por %p188, %p189
      %p191 = scmp.ne.s32.totalorder %s179, %s180
      %p192 = scmp.eq.s32.totalorder %s32, 3
      %p193 = por %p191, %p192
      %p195 = scmp.ne.s32.totalorder %s180, %s194
      %p196 = scmp.eq.s32.totalorder %s32, 0
      %p197 = por %p195, %p196
      %s199 = sadd.s32 %s198, 1
      %p202 = scmp.eq.s32.totalorder %s26, 3
      %p203 = scmp.ne.s32.totalorder %s198, %s200
      %p204 = scmp.eq.s32.totalorder %s26, 0
      %p205 = por %p203, %p204
      %p206 = scmp.ne.s32.totalorder %s198, %s200
      %p207 = scmp.eq.s32.totalorder %s31, 3
      %p208 = por %p206, %p207
      %p209 = scmp.ne.s32.totalorder %s200, %s201
      %p210 = scmp.eq.s32.totalorder %s31, 0
      %p211 = por %p209, %p210
      %p212 = scmp.ne.s32.totalorder %s200, %s201
      %p213 = scmp.eq.s32.totalorder %s32, 3
      %p214 = por %p212, %p213
      %p216 = scmp.ne.s32.totalorder %s201, %s215
      %p217 = scmp.eq.s32.totalorder %s32, 0
      %p218 = por %p216, %p217
      %s220 = sadd.s32 %s219, 1
      %p223 = scmp.eq.s32.totalorder %s26, 3
      %p224 = scmp.ne.s32.totalorder %s219, %s221
      %p225 = scmp.eq.s32.totalorder %s26, 0
      %p226 = por %p224, %p225
      %p227 = scmp.ne.s32.totalorder %s219, %s221
      %p228 = scmp.eq.s32.totalorder %s31, 3
      %p229 = por %p227, %p228
      %p230 = scmp.ne.s32.totalorder %s221, %s222
      %p231 = scmp.eq.s32.totalorder %s31, 0
      %p232 = por %p230, %p231
      %p233 = scmp.ne.s32.totalorder %s221, %s222
      %p234 = scmp.eq.s32.totalorder %s32, 3
      %p235 = por %p233, %p234
      %p237 = scmp.ne.s32.totalorder %s222, %s236
      %p238 = scmp.eq.s32.totalorder %s32, 0
      %p239 = por %p237, %p238
      %s241 = sadd.s32 %s240, 1
      %p244 = scmp.eq.s32.totalorder %s26, 3
      %p245 = scmp.ne.s32.totalorder %s240, %s242
      %p246 = scmp.eq.s32.totalorder %s26, 0
      %p247 = por %p245, %p246
      %p248 = scmp.ne.s32.totalorder %s240, %s242
      %p249 = scmp.eq.s32.totalorder %s31, 3
      %p250 = por %p248, %p249
      %p251 = scmp.ne.s32.totalorder %s242, %s243
      %p252 = scmp.eq.s32.totalorder %s31, 0
      %p253 = por %p251, %p252
      %p254 = scmp.ne.s32.totalorder %s242, %s243
      %p255 = scmp.eq.s32.totalorder %s32, 3
      %p256 = por %p254, %p255
      %p258 = scmp.ne.s32.totalorder %s243, %s257
      %p259 = scmp.eq.s32.totalorder %s32, 0
      %p260 = por %p258, %p259
      %s262 = sadd.s32 %s261, 1
      %p265 = scmp.eq.s32.totalorder %s26, 3
      %p266 = scmp.ne.s32.totalorder %s261, %s263
      %p267 = scmp.eq.s32.totalorder %s26, 0
      %p268 = por %p266, %p267
      %p269 = scmp.ne.s32.totalorder %s261, %s263
      %p270 = scmp.eq.s32.totalorder %s31, 3
      %p271 = por %p269, %p270
      %p272 = scmp.ne.s32.totalorder %s263, %s264
      %p273 = scmp.eq.s32.totalorder %s31, 0
      %p274 = por %p272, %p273
      %p275 = scmp.ne.s32.totalorder %s263, %s264
      %p276 = scmp.eq.s32.totalorder %s32, 3
      %p277 = por %p275, %p276
      %p279 = scmp.ne.s32.totalorder %s264, %s278
      %p280 = scmp.eq.s32.totalorder %s32, 0
      %p281 = por %p279, %p280
      %s283 = sadd.s32 %s282, 1
      %p286 = scmp.eq.s32.totalorder %s26, 3
      %p287 = scmp.ne.s32.totalorder %s282, %s284
      %p288 = scmp.eq.s32.totalorder %s26, 0
      %p289 = por %p287, %p288
      %p290 = scmp.ne.s32.totalorder %s282, %s284
      %p291 = scmp.eq.s32.totalorder %s31, 3
      %p292 = por %p290, %p291
      %p293 = scmp.ne.s32.totalorder %s284, %s285
      %p294 = scmp.eq.s32.totalorder %s31, 0
      %p295 = por %p293, %p294
      %p296 = scmp.ne.s32.totalorder %s284, %s285
      %p297 = scmp.eq.s32.totalorder %s32, 3
      %p298 = por %p296, %p297
      %p300 = scmp.ne.s32.totalorder %s285, %s299
      %p301 = scmp.eq.s32.totalorder %s32, 0
      %p302 = por %p300, %p301
      %s304 = sadd.s32 %s303, 1
      %p307 = scmp.eq.s32.totalorder %s26, 3
      %p308 = scmp.ne.s32.totalorder %s303, %s305
      %p309 = scmp.eq.s32.totalorder %s26, 0
      %p310 = por %p308, %p309
      %p311 = scmp.ne.s32.totalorder %s303, %s305
      %p312 = scmp.eq.s32.totalorder %s31, 3
      %p313 = por %p311, %p312
      %p314 = scmp.ne.s32.totalorder %s305, %s306
      %p315 = scmp.eq.s32.totalorder %s31, 0
      %p316 = por %p314, %p315
      %p317 = scmp.ne.s32.totalorder %s305, %s306
      %p318 = scmp.eq.s32.totalorder %s32, 3
      %p319 = por %p317, %p318
      %p321 = scmp.ne.s32.totalorder %s306, %s320
      %p322 = scmp.eq.s32.totalorder %s32, 0
      %p323 = por %p321, %p322
      %s325 = sadd.s32 %s324, 1
      %p328 = scmp.eq.s32.totalorder %s26, 3
      %p329 = scmp.ne.s32.totalorder %s324, %s326
      %p330 = scmp.eq.s32.totalorder %s26, 0
      %p331 = por %p329, %p330
      %p332 = scmp.ne.s32.totalorder %s324, %s326
      %p333 = scmp.eq.s32.totalorder %s31, 3
      %p334 = por %p332, %p333
      %p335 = scmp.ne.s32.totalorder %s326, %s327
      %p336 = scmp.eq.s32.totalorder %s31, 0
      %p337 = por %p335, %p336
      %p338 = scmp.ne.s32.totalorder %s326, %s327
      %p339 = scmp.eq.s32.totalorder %s32, 3
      %p340 = por %p338, %p339
      %p342 = scmp.ne.s32.totalorder %s327, %s341
      %p343 = scmp.eq.s32.totalorder %s32, 0
      %p344 = por %p342, %p343
      %s346 = sadd.s32 %s345, 1
      %p349 = scmp.eq.s32.totalorder %s26, 3
      %p350 = scmp.ne.s32.totalorder %s345, %s347
      %p351 = scmp.eq.s32.totalorder %s26, 0
      %p352 = por %p350, %p351
      %p353 = scmp.ne.s32.totalorder %s345, %s347
      %p354 = scmp.eq.s32.totalorder %s31, 3
      %p355 = por %p353, %p354
      %p356 = scmp.ne.s32.totalorder %s347, %s348
      %p357 = scmp.eq.s32.totalorder %s31, 0
      %p358 = por %p356, %p357
      %p359 = scmp.ne.s32.totalorder %s347, %s348
      %p360 = scmp.eq.s32.totalorder %s32, 3
      %p361 = por %p359, %p360
      %p363 = scmp.ne.s32.totalorder %s348, %s362
      %p364 = scmp.eq.s32.totalorder %s32, 0
      %p365 = por %p363, %p364
      %s367 = sadd.s32 %s366, 1
      %p370 = scmp.eq.s32.totalorder %s26, 3
      %p371 = scmp.ne.s32.totalorder %s366, %s368
      %p372 = scmp.eq.s32.totalorder %s26, 0
      %p373 = por %p371, %p372
      %p374 = scmp.ne.s32.totalorder %s366, %s368
      %p375 = scmp.eq.s32.totalorder %s31, 3
      %p376 = por %p374, %p375
      %p377 = scmp.ne.s32.totalorder %s368, %s369
      %p378 = scmp.eq.s32.totalorder %s31, 0
      %p379 = por %p377, %p378
      %p380 = scmp.ne.s32.totalorder %s368, %s369
      %p381 = scmp.eq.s32.totalorder %s32, 3
      %p382 = por %p380, %p381
      %p384 = scmp.ne.s32.totalorder %s369, %s383
      %p385 = scmp.eq.s32.totalorder %s32, 0
      %p386 = por %p384, %p385
      %s388 = sadd.s32 %s387, 1
      %p391 = scmp.eq.s32.totalorder %s26, 3
      %p392 = scmp.ne.s32.totalorder %s387, %s389
      %p393 = scmp.eq.s32.totalorder %s26, 0
      %p394 = por %p392, %p393
      %p395 = scmp.ne.s32.totalorder %s387, %s389
      %p396 = scmp.eq.s32.totalorder %s31, 3
      %p397 = por %p395, %p396
      %p398 = scmp.ne.s32.totalorder %s389, %s390
      %p399 = scmp.eq.s32.totalorder %s31, 0
      %p400 = por %p398, %p399
      %p401 = scmp.ne.s32.totalorder %s389, %s390
      %p402 = scmp.eq.s32.totalorder %s32, 3
      %p403 = por %p401, %p402
      %p405 = scmp.ne.s32.totalorder %s390, %s404
      %p406 = scmp.eq.s32.totalorder %s32, 0
      %p407 = por %p405, %p406
      %s408 = ssub.s32 %s33, %s45
      %p409 = scmp.eq.s32.totalorder %s408, 0
      %s411 = sadd.s32 %s410, 1
      %s412 = scalar_select %p409, %s410, %s411
      %p415 = pneg %p409
      %p416 = scmp.eq.s32.totalorder %s26, 3
      %p417 = por %p415, %p416
      %p418 = scmp.ne.s32.totalorder %s410, %s413
      %p419 = scmp.eq.s32.totalorder %s26, 0
      %p420 = por %p418, %p419
      %p421 = scmp.ne.s32.totalorder %s410, %s413
      %p422 = scmp.eq.s32.totalorder %s31, 3
      %p423 = por %p421, %p422
      %p424 = scmp.ne.s32.totalorder %s413, %s414
      %p425 = scmp.eq.s32.totalorder %s31, 0
      %p426 = por %p424, %p425
      %p427 = scmp.ne.s32.totalorder %s413, %s414
      %p428 = scmp.eq.s32.totalorder %s32, 3
      %p429 = por %p427, %p428
      %p431 = scmp.ne.s32.totalorder %s414, %s430
      %p432 = scmp.eq.s32.totalorder %s32, 0
      %p433 = por %p431, %p432
      %p434 = scmp.le.s32.totalorder 1, %s26
      %p435 = scmp.lt.s32.totalorder %s26, 5
      %p436 = pnand %p434, %p435
      %p437 = pneg %p436
      // Predicated region
      $region9: #{tpu_custom_call.1} parent=5 // pred_check
        _
      $region10: #{tpu_custom_call.1} parent=5 // pred_check_branch
        %439 = sbr.rel (%p436) target = $region12
      $region11: #{tpu_custom_call.1} parent=5 // pred_region
        %s440 = ssub.s32 %s26, 1
        // Predicated region
        $region13: #{tpu_custom_call.1} parent=11 // pred_check
          %p441 = pneg %p85
        $region14: #{tpu_custom_call.1} parent=11 // pred_check_branch
          %443 = sbr.rel (%p441) target = $region16
        $region15: #{tpu_custom_call.1} parent=11 // pred_region
          _
        $region16: #{tpu_custom_call.1} parent=11 // pred_fallthru
          _
        // Predicated region
        $region17: #{tpu_custom_call.1} parent=11 // pred_check
          %p444 = pneg %p106
        $region18: #{tpu_custom_call.1} parent=11 // pred_check_branch
          %446 = sbr.rel (%p444) target = $region20
        $region19: #{tpu_custom_call.1} parent=11 // pred_region
          _
        $region20: #{tpu_custom_call.1} parent=11 // pred_fallthru
          _
        // Predicated region
        $region21: #{tpu_custom_call.1} parent=11 // pred_check
          %p447 = pneg %p127
        $region22: #{tpu_custom_call.1} parent=11 // pred_check_branch
          %449 = sbr.rel (%p447) target = $region24
        $region23: #{tpu_custom_call.1} parent=11 // pred_region
          _
        $region24: #{tpu_custom_call.1} parent=11 // pred_fallthru
          _
        // Predicated region
        $region25: #{tpu_custom_call.1} parent=11 // pred_check
          %p450 = pneg %p148
        $region26: #{tpu_custom_call.1} parent=11 // pred_check_branch
          %452 = sbr.rel (%p450) target = $region28
        $region27: #{tpu_custom_call.1} parent=11 // pred_region
          _
        $region28: #{tpu_custom_call.1} parent=11 // pred_fallthru
          _
        // Predicated region
        $region29: #{tpu_custom_call.1} parent=11 // pred_check
          %p453 = pneg %p169
        $region30: #{tpu_custom_call.1} parent=11 // pred_check_branch
          %455 = sbr.rel (%p453) target = $region32
        $region31: #{tpu_custom_call.1} parent=11 // pred_region
          _
        $region32: #{tpu_custom_call.1} parent=11 // pred_fallthru
          _
        // Predicated region
        $region33: #{tpu_custom_call.1} parent=11 // pred_check
          %p456 = pneg %p190
        $region34: #{tpu_custom_call.1} parent=11 // pred_check_branch
          %458 = sbr.rel (%p456) target = $region36
        $region35: #{tpu_custom_call.1} parent=11 // pred_region
          _
        $region36: #{tpu_custom_call.1} parent=11 // pred_fallthru
          _
        // Predicated region
        $region37: #{tpu_custom_call.1} parent=11 // pred_check
          %p459 = pneg %p211
        $region38: #{tpu_custom_call.1} parent=11 // pred_check_branch
          %461 = sbr.rel (%p459) target = $region40
        $region39: #{tpu_custom_call.1} parent=11 // pred_region
          _
        $region40: #{tpu_custom_call.1} parent=11 // pred_fallthru
          _
        // Predicated region
        $region41: #{tpu_custom_call.1} parent=11 // pred_check
          %p462 = pneg %p232
        $region42: #{tpu_custom_call.1} parent=11 // pred_check_branch
          %464 = sbr.rel (%p462) target = $region44
        $region43: #{tpu_custom_call.1} parent=11 // pred_region
          _
        $region44: #{tpu_custom_call.1} parent=11 // pred_fallthru
          _
        // Predicated region
        $region45: #{tpu_custom_call.1} parent=11 // pred_check
          %p465 = pneg %p253
        $region46: #{tpu_custom_call.1} parent=11 // pred_check_branch
          %467 = sbr.rel (%p465) target = $region48
        $region47: #{tpu_custom_call.1} parent=11 // pred_region
          _
        $region48: #{tpu_custom_call.1} parent=11 // pred_fallthru
          _
        // Predicated region
        $region49: #{tpu_custom_call.1} parent=11 // pred_check
          %p468 = pneg %p274
        $region50: #{tpu_custom_call.1} parent=11 // pred_check_branch
          %470 = sbr.rel (%p468) target = $region52
        $region51: #{tpu_custom_call.1} parent=11 // pred_region
          _
        $region52: #{tpu_custom_call.1} parent=11 // pred_fallthru
          _
        // Predicated region
        $region53: #{tpu_custom_call.1} parent=11 // pred_check
          %p471 = pneg %p295
        $region54: #{tpu_custom_call.1} parent=11 // pred_check_branch
          %473 = sbr.rel (%p471) target = $region56
        $region55: #{tpu_custom_call.1} parent=11 // pred_region
          _
        $region56: #{tpu_custom_call.1} parent=11 // pred_fallthru
          _
        // Predicated region
        $region57: #{tpu_custom_call.1} parent=11 // pred_check
          %p474 = pneg %p316
        $region58: #{tpu_custom_call.1} parent=11 // pred_check_branch
          %476 = sbr.rel (%p474) target = $region60
        $region59: #{tpu_custom_call.1} parent=11 // pred_region
          _
        $region60: #{tpu_custom_call.1} parent=11 // pred_fallthru
          _
        // Predicated region
        $region61: #{tpu_custom_call.1} parent=11 // pred_check
          %p477 = pneg %p337
        $region62: #{tpu_custom_call.1} parent=11 // pred_check_branch
          %479 = sbr.rel (%p477) target = $region64
        $region63: #{tpu_custom_call.1} parent=11 // pred_region
          _
        $region64: #{tpu_custom_call.1} parent=11 // pred_fallthru
          _
        // Predicated region
        $region65: #{tpu_custom_call.1} parent=11 // pred_check
          %p480 = pneg %p358
        $region66: #{tpu_custom_call.1} parent=11 // pred_check_branch
          %482 = sbr.rel (%p480) target = $region68
        $region67: #{tpu_custom_call.1} parent=11 // pred_region
          _
        $region68: #{tpu_custom_call.1} parent=11 // pred_fallthru
          _
        // Predicated region
        $region69: #{tpu_custom_call.1} parent=11 // pred_check
          %p483 = pneg %p379
        $region70: #{tpu_custom_call.1} parent=11 // pred_check_branch
          %485 = sbr.rel (%p483) target = $region72
        $region71: #{tpu_custom_call.1} parent=11 // pred_region
          _
        $region72: #{tpu_custom_call.1} parent=11 // pred_fallthru
          _
        // Predicated region
        $region73: #{tpu_custom_call.1} parent=11 // pred_check
          %p486 = pneg %p400
        $region74: #{tpu_custom_call.1} parent=11 // pred_check_branch
          %488 = sbr.rel (%p486) target = $region76
        $region75: #{tpu_custom_call.1} parent=11 // pred_region
          _
        $region76: #{tpu_custom_call.1} parent=11 // pred_fallthru
          _
      $region12: #{tpu_custom_call.1} parent=5 // pred_fallthru
        _
      %p489 = scmp.lt.s32.totalorder %s26, 4
      // Predicated region
      $region77: #{tpu_custom_call.1} parent=5 // pred_check
        %p490 = pneg %p489
      $region78: #{tpu_custom_call.1} parent=5 // pred_check_branch
        %492 = sbr.rel (%p490) target = $region80
      $region79: #{tpu_custom_call.1} parent=5 // pred_region
        // Predicated region
        $region81: #{tpu_custom_call.1} parent=79 // pred_check
          %p493 = pneg %p58
        $region82: #{tpu_custom_call.1} parent=79 // pred_check_branch
          %495 = sbr.rel (%p493) target = $region84
        $region83: #{tpu_custom_call.1} parent=79 // pred_region
          %p496 = scmp.lt.s32.totalorder %s33, 1
          %s497 = scalar_select %p496, %s33, 1
          %s498 = smul.addr %s497, 8
          %s499 = scalar_lea.vmem %s0, %s498
        $region84: #{tpu_custom_call.1} parent=79 // pred_fallthru
          _
      $region80: #{tpu_custom_call.1} parent=5 // pred_fallthru
        _
      %p500 = scmp.le.s32.totalorder 1, %s26
      %p501 = scmp.lt.s32.totalorder %s26, 5
      %p502 = pnand %p500, %p501
      %p503 = pneg %p502
      // Predicated region
      $region85: #{tpu_custom_call.1} parent=5 // pred_check
        _
      $region86: #{tpu_custom_call.1} parent=5 // pred_check_branch
        %505 = sbr.rel (%p502) target = $region88
      $region87: #{tpu_custom_call.1} parent=5 // pred_region
        %s506 = ssub.s32 %s26, 1
        %p507 = scmp.lt.s32.totalorder %s35, 1
        %s508 = scalar_select %p507, %s35, 1
        %s509 = smul.addr %s508, 8
        %s510 = scalar_lea.vmem %s0, %s509
        %p511 = pneg %p64
        %p512 = pneg %p61
        %p513 = pneg %p85
        %p514 = pneg %p82
        %p515 = pneg %p106
        %p516 = pneg %p103
        %p517 = pneg %p127
        %p518 = pneg %p124
        %p519 = pneg %p148
        %p520 = pneg %p145
        %p521 = pneg %p169
        %p522 = pneg %p166
        %p523 = pneg %p190
        %p524 = pneg %p187
        %p525 = pneg %p211
        %p526 = pneg %p208
        %p527 = pneg %p232
        %p528 = pneg %p229
        %p529 = pneg %p253
        %p530 = pneg %p250
        %p531 = pneg %p274
        %p532 = pneg %p271
        %p533 = pneg %p295
        %p534 = pneg %p292
        %p535 = pneg %p316
        %p536 = pneg %p313
        %p537 = pneg %p337
        %p538 = pneg %p334
        %p539 = pneg %p358
        %p540 = pneg %p355
        %p541 = pneg %p379
        %p542 = pneg %p376
        %p543 = pneg %p400
        %p544 = pneg %p397
        %p545 = pneg %p426
        %p546 = pneg %p423
        %s547 = sand.u32 %s413, 1
        %s548 = scalar_lea.sflag [#allocation3], %s547
        %s549 = sand.u32 %s413, 1
        %s550 = smul.addr %s549, 8
        %s551 = scalar_lea.vmem [#allocation2], %s550
        %p552 = scmp.lt.s32.totalorder %s35, 1
        %s553 = scalar_select %p552, %s35, 1
        %s554 = smul.addr %s553, 8
        %s555 = scalar_lea.vmem %s0, %s554
        %p557 = scmp.eq.s32.totalorder %s36, 0
        // Predicated region
        $region89: #{tpu_custom_call.1} parent=87 // pred_check
          %p558 = pneg %p557
        $region90: #{tpu_custom_call.1} parent=87 // pred_check_branch
          %560 = sbr.rel (%p558) target = $region92
        $region91: #{tpu_custom_call.1} parent=87 // pred_region
          %v561 = vld [vmem:[%s555] sm:$0xff]
          %vm562 = vcmask 261120
          %563 = vst.msk [vmem:[%s551] sm:$0xff] %vm562, %v561
        $region92: #{tpu_custom_call.1} parent=87 // pred_fallthru
          _
        %v564 = vld [vmem:[%s551] sm:$0xff]
        %v565 = vpack.c.bf16 %v564, %v564
        %v566 = vld [vmem:[%s1] sm:$0xf]
        %v567 = vld [vmem:[%s1 + $0x4] sm:$0xf]
        %v568 = vld [vmem:[%s1 + $0x8] sm:$0xf]
        %v569 = vld [vmem:[%s1 + $0xc] sm:$0xf]
        %v570 = vld [vmem:[%s1 + $0x10] sm:$0xf]
        %v571 = vld [vmem:[%s1 + $0x14] sm:$0xf]
        %v572 = vld [vmem:[%s1 + $0x18] sm:$0xf]
        %v573 = vld [vmem:[%s1 + $0x1c] sm:$0xf]
        %v574 = vld [vmem:[%s1 + $0x20] sm:$0xf]
        %v575 = vld [vmem:[%s1 + $0x24] sm:$0xf]
        %v576 = vld [vmem:[%s1 + $0x28] sm:$0xf]
        %v577 = vld [vmem:[%s1 + $0x2c] sm:$0xf]
        %v578 = vld [vmem:[%s1 + $0x30] sm:$0xf]
        %v579 = vld [vmem:[%s1 + $0x34] sm:$0xf]
        %v580 = vld [vmem:[%s1 + $0x38] sm:$0xf]
        %v581 = vld [vmem:[%s1 + $0x3c] sm:$0xf]
        %v582 = vld [vmem:[%s4] sm:$0x1]
        %v583 = vld [vmem:[%s4 + $0x1] sm:$0x1]
        %v584 = vld [vmem:[%s4 + $0x2] sm:$0x1]
        %v585 = vld [vmem:[%s4 + $0x3] sm:$0x1]
        %v590 = vlaneseq
        %v591 = vshrl.u32 %v590, 7
        %v592 = vsub.s32 0, %v591
        %v593 = vrot.slane %v582, %v592
        %v594 = vlaneseq
        %v595 = vshrl.u32 %v594, 7
        %v596 = vsub.s32 0, %v595
        %v597 = vrot.slane %v583, %v596
        %v598 = vlaneseq
        %v599 = vshrl.u32 %v598, 7
        %v600 = vsub.s32 0, %v599
        %v601 = vrot.slane %v584, %v600
        %v602 = vlaneseq
        %v603 = vshrl.u32 %v602, 7
        %v604 = vsub.s32 0, %v603
        %v605 = vrot.slane %v585, %v604
        %v614 = vunpack.c.l.b16 %v566
        %v615 = vunpack.c.l.b16 %v567
        %v616 = vunpack.c.l.b16 %v568
        %v617 = vunpack.c.l.b16 %v569
        %v618 = vpack.c.b16 %v615, %v614
        %v619 = vpack.c.b16 %v617, %v616
        %vm622 = vcmask 261120
        %v624 = vsel %vm622, %v565, 0
        %626 = vmatprep.subr.bf16.mxu0 0
        %627 = vmatpush1.bf16.msra.mxu0 0
        %628 = vmatprep.subr.bf16.mxu0 0
        %629 = vmatpush1.bf16.msra.mxu0 0
        %630 = vmatprep.subr.bf16.mxu0 0
        %631 = vmatpush1.bf16.msra.mxu0 0
        %632 = vmatprep.subr.bf16.mxu0 0
        %633 = vmatpush1.bf16.msra.mxu0 0
        %634 = vmatprep.subr.bf16.mxu0 0
        %635 = vmatpush1.bf16.msra.mxu0 0
        %636 = vmatprep.subr.bf16.mxu0 0
        %637 = vmatpush1.bf16.msra.mxu0 0
        %638 = vmatprep.subr.bf16.mxu0 0
        %639 = vmatpush1.bf16.msra.mxu0 %v619
        %640 = vmatprep.subr.bf16.mxu0 0
        %641 = vmatpush1.bf16.msra.mxu0 %v618
        %642 = vmatprep.subr.bf16.mxu0 0
        %643 = vmatpush2.bf16.msra.mxu0 0
        %644 = vmatprep.subr.bf16.mxu0 0
        %645 = vmatpush2.bf16.msra.mxu0 0
        %646 = vmatprep.subr.bf16.mxu0 0
        %647 = vmatpush2.bf16.msra.mxu0 0
        %648 = vmatprep.subr.bf16.mxu0 0
        %649 = vmatpush2.bf16.msra.mxu0 0
        %650 = vmatprep.subr.bf16.mxu0 0
        %651 = vmatpush2.bf16.msra.mxu0 0
        %652 = vmatprep.subr.bf16.mxu0 0
        %653 = vmatpush2.bf16.msra.mxu0 0
        %654 = vmatprep.subr.bf16.mxu0 0
        %655 = vmatpush2.bf16.msra.mxu0 0
        %656 = vmatprep.subr.bf16.mxu0 0
        %657 = vmatpush2.bf16.msra.mxu0 0
        %658 = vmatprep.mubr.bf16.mxu0 0
        %659 = vmatmul.mubr.bf16.gmra.mxu0 %v624
        %v660 = vpop.f32.mrf.mxu0
        %v661 = vadd.f32 %v593, %v660
        %v662 = vpop.f32.mrf.mxu0
        %v663 = vpop.f32.mrf.mxu0
        %v664 = vpop.f32.mrf.mxu0
        %665 = vdwg.mxu0
        %v670 = vunpack.c.l.b16 %v570
        %v671 = vunpack.c.l.b16 %v571
        %v672 = vunpack.c.l.b16 %v572
        %v673 = vunpack.c.l.b16 %v573
        %v674 = vpack.c.b16 %v671, %v670
        %v675 = vpack.c.b16 %v673, %v672
        %678 = vmatprep.subr.bf16.mxu0 0
        %679 = vmatpush1.bf16.msra.mxu0 0
        %680 = vmatprep.subr.bf16.mxu0 0
        %681 = vmatpush1.bf16.msra.mxu0 0
        %682 = vmatprep.subr.bf16.mxu0 0
        %683 = vmatpush1.bf16.msra.mxu0 0
        %684 = vmatprep.subr.bf16.mxu0 0
        %685 = vmatpush1.bf16.msra.mxu0 0
        %686 = vmatprep.subr.bf16.mxu0 0
        %687 = vmatpush1.bf16.msra.mxu0 0
        %688 = vmatprep.subr.bf16.mxu0 0
        %689 = vmatpush1.bf16.msra.mxu0 0
        %690 = vmatprep.subr.bf16.mxu0 0
        %691 = vmatpush1.bf16.msra.mxu0 %v675
        %692 = vmatprep.subr.bf16.mxu0 0
        %693 = vmatpush1.bf16.msra.mxu0 %v674
        %694 = vmatprep.subr.bf16.mxu0 0
        %695 = vmatpush2.bf16.msra.mxu0 0
        %696 = vmatprep.subr.bf16.mxu0 0
        %697 = vmatpush2.bf16.msra.mxu0 0
        %698 = vmatprep.subr.bf16.mxu0 0
        %699 = vmatpush2.bf16.msra.mxu0 0
        %700 = vmatprep.subr.bf16.mxu0 0
        %701 = vmatpush2.bf16.msra.mxu0 0
        %702 = vmatprep.subr.bf16.mxu0 0
        %703 = vmatpush2.bf16.msra.mxu0 0
        %704 = vmatprep.subr.bf16.mxu0 0
        %705 = vmatpush2.bf16.msra.mxu0 0
        %706 = vmatprep.subr.bf16.mxu0 0
        %707 = vmatpush2.bf16.msra.mxu0 0
        %708 = vmatprep.subr.bf16.mxu0 0
        %709 = vmatpush2.bf16.msra.mxu0 0
        %710 = vmatprep.mubr.bf16.mxu0 0
        %711 = vmatmul.mubr.bf16.gmra.mxu0 %v624
        %v712 = vpop.f32.mrf.mxu0
        %v713 = vadd.f32 %v597, %v712
        %v714 = vpop.f32.mrf.mxu0
        %v715 = vpop.f32.mrf.mxu0
        %v716 = vpop.f32.mrf.mxu0
        %717 = vdwg.mxu0
        %v722 = vunpack.c.l.b16 %v574
        %v723 = vunpack.c.l.b16 %v575
        %v724 = vunpack.c.l.b16 %v576
        %v725 = vunpack.c.l.b16 %v577
        %v726 = vpack.c.b16 %v723, %v722
        %v727 = vpack.c.b16 %v725, %v724
        %730 = vmatprep.subr.bf16.mxu0 0
        %731 = vmatpush1.bf16.msra.mxu0 0
        %732 = vmatprep.subr.bf16.mxu0 0
        %733 = vmatpush1.bf16.msra.mxu0 0
        %734 = vmatprep.subr.bf16.mxu0 0
        %735 = vmatpush1.bf16.msra.mxu0 0
        %736 = vmatprep.subr.bf16.mxu0 0
        %737 = vmatpush1.bf16.msra.mxu0 0
        %738 = vmatprep.subr.bf16.mxu0 0
        %739 = vmatpush1.bf16.msra.mxu0 0
        %740 = vmatprep.subr.bf16.mxu0 0
        %741 = vmatpush1.bf16.msra.mxu0 0
        %742 = vmatprep.subr.bf16.mxu0 0
        %743 = vmatpush1.bf16.msra.mxu0 %v727
        %744 = vmatprep.subr.bf16.mxu0 0
        %745 = vmatpush1.bf16.msra.mxu0 %v726
        %746 = vmatprep.subr.bf16.mxu0 0
        %747 = vmatpush2.bf16.msra.mxu0 0
        %748 = vmatprep.subr.bf16.mxu0 0
        %749 = vmatpush2.bf16.msra.mxu0 0
        %750 = vmatprep.subr.bf16.mxu0 0
        %751 = vmatpush2.bf16.msra.mxu0 0
        %752 = vmatprep.subr.bf16.mxu0 0
        %753 = vmatpush2.bf16.msra.mxu0 0
        %754 = vmatprep.subr.bf16.mxu0 0
        %755 = vmatpush2.bf16.msra.mxu0 0
        %756 = vmatprep.subr.bf16.mxu0 0
        %757 = vmatpush2.bf16.msra.mxu0 0
        %758 = vmatprep.subr.bf16.mxu0 0
        %759 = vmatpush2.bf16.msra.mxu0 0
        %760 = vmatprep.subr.bf16.mxu0 0
        %761 = vmatpush2.bf16.msra.mxu0 0
        %762 = vmatprep.mubr.bf16.mxu0 0
        %763 = vmatmul.mubr.bf16.gmra.mxu0 %v624
        %v764 = vpop.f32.mrf.mxu0
        %v765 = vadd.f32 %v601, %v764
        %v766 = vpop.f32.mrf.mxu0
        %v767 = vpop.f32.mrf.mxu0
        %v768 = vpop.f32.mrf.mxu0
        %769 = vdwg.mxu0
        %v774 = vunpack.c.l.b16 %v578
        %v775 = vunpack.c.l.b16 %v579
        %v776 = vunpack.c.l.b16 %v580
        %v777 = vunpack.c.l.b16 %v581
        %v778 = vpack.c.b16 %v775, %v774
        %v779 = vpack.c.b16 %v777, %v776
        %782 = vmatprep.subr.bf16.mxu0 0
        %783 = vmatpush1.bf16.msra.mxu0 0
        %784 = vmatprep.subr.bf16.mxu0 0
        %785 = vmatpush1.bf16.msra.mxu0 0
        %786 = vmatprep.subr.bf16.mxu0 0
        %787 = vmatpush1.bf16.msra.mxu0 0
        %788 = vmatprep.subr.bf16.mxu0 0
        %789 = vmatpush1.bf16.msra.mxu0 0
        %790 = vmatprep.subr.bf16.mxu0 0
        %791 = vmatpush1.bf16.msra.mxu0 0
        %792 = vmatprep.subr.bf16.mxu0 0
        %793 = vmatpush1.bf16.msra.mxu0 0
        %794 = vmatprep.subr.bf16.mxu0 0
        %795 = vmatpush1.bf16.msra.mxu0 %v779
        %796 = vmatprep.subr.bf16.mxu0 0
        %797 = vmatpush1.bf16.msra.mxu0 %v778
        %798 = vmatprep.subr.bf16.mxu0 0
        %799 = vmatpush2.bf16.msra.mxu0 0
        %800 = vmatprep.subr.bf16.mxu0 0
        %801 = vmatpush2.bf16.msra.mxu0 0
        %802 = vmatprep.subr.bf16.mxu0 0
        %803 = vmatpush2.bf16.msra.mxu0 0
        %804 = vmatprep.subr.bf16.mxu0 0
        %805 = vmatpush2.bf16.msra.mxu0 0
        %806 = vmatprep.subr.bf16.mxu0 0
        %807 = vmatpush2.bf16.msra.mxu0 0
        %808 = vmatprep.subr.bf16.mxu0 0
        %809 = vmatpush2.bf16.msra.mxu0 0
        %810 = vmatprep.subr.bf16.mxu0 0
        %811 = vmatpush2.bf16.msra.mxu0 0
        %812 = vmatprep.subr.bf16.mxu0 0
        %813 = vmatpush2.bf16.msra.mxu0 0
        %814 = vmatprep.mubr.bf16.mxu0 0
        %815 = vmatmul.mubr.bf16.gmra.mxu0 %v624
        %v816 = vpop.f32.mrf.mxu0
        %v817 = vadd.f32 %v605, %v816
        %v818 = vpop.f32.mrf.mxu0
        %v819 = vpop.f32.mrf.mxu0
        %v820 = vpop.f32.mrf.mxu0
        %821 = vdwg.mxu0
        %v822 = vld [vmem:[%s2] sm:$0xf]
        %v823 = vld [vmem:[%s2 + $0x4] sm:$0xf]
        %v824 = vld [vmem:[%s2 + $0x8] sm:$0xf]
        %v825 = vld [vmem:[%s2 + $0xc] sm:$0xf]
        %v826 = vld [vmem:[%s2 + $0x10] sm:$0xf]
        %v827 = vld [vmem:[%s2 + $0x14] sm:$0xf]
        %v828 = vld [vmem:[%s2 + $0x18] sm:$0xf]
        %v829 = vld [vmem:[%s2 + $0x1c] sm:$0xf]
        %v830 = vld [vmem:[%s2 + $0x20] sm:$0xf]
        %v831 = vld [vmem:[%s2 + $0x24] sm:$0xf]
        %v832 = vld [vmem:[%s2 + $0x28] sm:$0xf]
        %v833 = vld [vmem:[%s2 + $0x2c] sm:$0xf]
        %v834 = vld [vmem:[%s2 + $0x30] sm:$0xf]
        %v835 = vld [vmem:[%s2 + $0x34] sm:$0xf]
        %v836 = vld [vmem:[%s2 + $0x38] sm:$0xf]
        %v837 = vld [vmem:[%s2 + $0x3c] sm:$0xf]
        %v838 = vld [vmem:[%s5] sm:$0x1]
        %v839 = vld [vmem:[%s5 + $0x1] sm:$0x1]
        %v840 = vld [vmem:[%s5 + $0x2] sm:$0x1]
        %v841 = vld [vmem:[%s5 + $0x3] sm:$0x1]
        %v846 = vlaneseq
        %v847 = vshrl.u32 %v846, 7
        %v848 = vsub.s32 0, %v847
        %v849 = vrot.slane %v838, %v848
        %v850 = vlaneseq
        %v851 = vshrl.u32 %v850, 7
        %v852 = vsub.s32 0, %v851
        %v853 = vrot.slane %v839, %v852
        %v854 = vlaneseq
        %v855 = vshrl.u32 %v854, 7
        %v856 = vsub.s32 0, %v855
        %v857 = vrot.slane %v840, %v856
        %v858 = vlaneseq
        %v859 = vshrl.u32 %v858, 7
        %v860 = vsub.s32 0, %v859
        %v861 = vrot.slane %v841, %v860
        %v870 = vunpack.c.l.b16 %v822
        %v871 = vunpack.c.l.b16 %v823
        %v872 = vunpack.c.l.b16 %v824
        %v873 = vunpack.c.l.b16 %v825
        %v874 = vpack.c.b16 %v871, %v870
        %v875 = vpack.c.b16 %v873, %v872
        %878 = vmatprep.subr.bf16.mxu0 0
        %879 = vmatpush1.bf16.msra.mxu0 0
        %880 = vmatprep.subr.bf16.mxu0 0
        %881 = vmatpush1.bf16.msra.mxu0 0
        %882 = vmatprep.subr.bf16.mxu0 0
        %883 = vmatpush1.bf16.msra.mxu0 0
        %884 = vmatprep.subr.bf16.mxu0 0
        %885 = vmatpush1.bf16.msra.mxu0 0
        %886 = vmatprep.subr.bf16.mxu0 0
        %887 = vmatpush1.bf16.msra.mxu0 0
        %888 = vmatprep.subr.bf16.mxu0 0
        %889 = vmatpush1.bf16.msra.mxu0 0
        %890 = vmatprep.subr.bf16.mxu0 0
        %891 = vmatpush1.bf16.msra.mxu0 %v875
        %892 = vmatprep.subr.bf16.mxu0 0
        %893 = vmatpush1.bf16.msra.mxu0 %v874
        %894 = vmatprep.subr.bf16.mxu0 0
        %895 = vmatpush2.bf16.msra.mxu0 0
        %896 = vmatprep.subr.bf16.mxu0 0
        %897 = vmatpush2.bf16.msra.mxu0 0
        %898 = vmatprep.subr.bf16.mxu0 0
        %899 = vmatpush2.bf16.msra.mxu0 0
        %900 = vmatprep.subr.bf16.mxu0 0
        %901 = vmatpush2.bf16.msra.mxu0 0
        %902 = vmatprep.subr.bf16.mxu0 0
        %903 = vmatpush2.bf16.msra.mxu0 0
        %904 = vmatprep.subr.bf16.mxu0 0
        %905 = vmatpush2.bf16.msra.mxu0 0
        %906 = vmatprep.subr.bf16.mxu0 0
        %907 = vmatpush2.bf16.msra.mxu0 0
        %908 = vmatprep.subr.bf16.mxu0 0
        %909 = vmatpush2.bf16.msra.mxu0 0
        %910 = vmatprep.mubr.bf16.mxu0 0
        %911 = vmatmul.mubr.bf16.gmra.mxu0 %v624
        %v912 = vpop.f32.mrf.mxu0
        %v913 = vadd.f32 %v849, %v912
        %v914 = vpop.f32.mrf.mxu0
        %v915 = vpop.f32.mrf.mxu0
        %v916 = vpop.f32.mrf.mxu0
        %917 = vdwg.mxu0
        %v922 = vunpack.c.l.b16 %v826
        %v923 = vunpack.c.l.b16 %v827
        %v924 = vunpack.c.l.b16 %v828
        %v925 = vunpack.c.l.b16 %v829
        %v926 = vpack.c.b16 %v923, %v922
        %v927 = vpack.c.b16 %v925, %v924
        %930 = vmatprep.subr.bf16.mxu0 0
        %931 = vmatpush1.bf16.msra.mxu0 0
        %932 = vmatprep.subr.bf16.mxu0 0
        %933 = vmatpush1.bf16.msra.mxu0 0
        %934 = vmatprep.subr.bf16.mxu0 0
        %935 = vmatpush1.bf16.msra.mxu0 0
        %936 = vmatprep.subr.bf16.mxu0 0
        %937 = vmatpush1.bf16.msra.mxu0 0
        %938 = vmatprep.subr.bf16.mxu0 0
        %939 = vmatpush1.bf16.msra.mxu0 0
        %940 = vmatprep.subr.bf16.mxu0 0
        %941 = vmatpush1.bf16.msra.mxu0 0
        %942 = vmatprep.subr.bf16.mxu0 0
        %943 = vmatpush1.bf16.msra.mxu0 %v927
        %944 = vmatprep.subr.bf16.mxu0 0
        %945 = vmatpush1.bf16.msra.mxu0 %v926
        %946 = vmatprep.subr.bf16.mxu0 0
        %947 = vmatpush2.bf16.msra.mxu0 0
        %948 = vmatprep.subr.bf16.mxu0 0
        %949 = vmatpush2.bf16.msra.mxu0 0
        %950 = vmatprep.subr.bf16.mxu0 0
        %951 = vmatpush2.bf16.msra.mxu0 0
        %952 = vmatprep.subr.bf16.mxu0 0
        %953 = vmatpush2.bf16.msra.mxu0 0
        %954 = vmatprep.subr.bf16.mxu0 0
        %955 = vmatpush2.bf16.msra.mxu0 0
        %956 = vmatprep.subr.bf16.mxu0 0
        %957 = vmatpush2.bf16.msra.mxu0 0
        %958 = vmatprep.subr.bf16.mxu0 0
        %959 = vmatpush2.bf16.msra.mxu0 0
        %960 = vmatprep.subr.bf16.mxu0 0
        %961 = vmatpush2.bf16.msra.mxu0 0
        %962 = vmatprep.mubr.bf16.mxu0 0
        %963 = vmatmul.mubr.bf16.gmra.mxu0 %v624
        %v964 = vpop.f32.mrf.mxu0
        %v965 = vadd.f32 %v853, %v964
        %v966 = vpop.f32.mrf.mxu0
        %v967 = vpop.f32.mrf.mxu0
        %v968 = vpop.f32.mrf.mxu0
        %969 = vdwg.mxu0
        %v974 = vunpack.c.l.b16 %v830
        %v975 = vunpack.c.l.b16 %v831
        %v976 = vunpack.c.l.b16 %v832
        %v977 = vunpack.c.l.b16 %v833
        %v978 = vpack.c.b16 %v975, %v974
        %v979 = vpack.c.b16 %v977, %v976
        %982 = vmatprep.subr.bf16.mxu0 0
        %983 = vmatpush1.bf16.msra.mxu0 0
        %984 = vmatprep.subr.bf16.mxu0 0
        %985 = vmatpush1.bf16.msra.mxu0 0
        %986 = vmatprep.subr.bf16.mxu0 0
        %987 = vmatpush1.bf16.msra.mxu0 0
        %988 = vmatprep.subr.bf16.mxu0 0
        %989 = vmatpush1.bf16.msra.mxu0 0
        %990 = vmatprep.subr.bf16.mxu0 0
        %991 = vmatpush1.bf16.msra.mxu0 0
        %992 = vmatprep.subr.bf16.mxu0 0
        %993 = vmatpush1.bf16.msra.mxu0 0
        %994 = vmatprep.subr.bf16.mxu0 0
        %995 = vmatpush1.bf16.msra.mxu0 %v979
        %996 = vmatprep.subr.bf16.mxu0 0
        %997 = vmatpush1.bf16.msra.mxu0 %v978
        %998 = vmatprep.subr.bf16.mxu0 0
        %999 = vmatpush2.bf16.msra.mxu0 0
        %1000 = vmatprep.subr.bf16.mxu0 0
        %1001 = vmatpush2.bf16.msra.mxu0 0
        %1002 = vmatprep.subr.bf16.mxu0 0
        %1003 = vmatpush2.bf16.msra.mxu0 0
        %1004 = vmatprep.subr.bf16.mxu0 0
        %1005 = vmatpush2.bf16.msra.mxu0 0
        %1006 = vmatprep.subr.bf16.mxu0 0
        %1007 = vmatpush2.bf16.msra.mxu0 0
        %1008 = vmatprep.subr.bf16.mxu0 0
        %1009 = vmatpush2.bf16.msra.mxu0 0
        %1010 = vmatprep.subr.bf16.mxu0 0
        %1011 = vmatpush2.bf16.msra.mxu0 0
        %1012 = vmatprep.subr.bf16.mxu0 0
        %1013 = vmatpush2.bf16.msra.mxu0 0
        %1014 = vmatprep.mubr.bf16.mxu0 0
        %1015 = vmatmul.mubr.bf16.gmra.mxu0 %v624
        %v1016 = vpop.f32.mrf.mxu0
        %v1017 = vadd.f32 %v857, %v1016
        %v1018 = vpop.f32.mrf.mxu0
        %v1019 = vpop.f32.mrf.mxu0
        %v1020 = vpop.f32.mrf.mxu0
        %1021 = vdwg.mxu0
        %v1026 = vunpack.c.l.b16 %v834
        %v1027 = vunpack.c.l.b16 %v835
        %v1028 = vunpack.c.l.b16 %v836
        %v1029 = vunpack.c.l.b16 %v837
        %v1030 = vpack.c.b16 %v1027, %v1026
        %v1031 = vpack.c.b16 %v1029, %v1028
        %1034 = vmatprep.subr.bf16.mxu0 0
        %1035 = vmatpush1.bf16.msra.mxu0 0
        %1036 = vmatprep.subr.bf16.mxu0 0
        %1037 = vmatpush1.bf16.msra.mxu0 0
        %1038 = vmatprep.subr.bf16.mxu0 0
        %1039 = vmatpush1.bf16.msra.mxu0 0
        %1040 = vmatprep.subr.bf16.mxu0 0
        %1041 = vmatpush1.bf16.msra.mxu0 0
        %1042 = vmatprep.subr.bf16.mxu0 0
        %1043 = vmatpush1.bf16.msra.mxu0 0
        %1044 = vmatprep.subr.bf16.mxu0 0
        %1045 = vmatpush1.bf16.msra.mxu0 0
        %1046 = vmatprep.subr.bf16.mxu0 0
        %1047 = vmatpush1.bf16.msra.mxu0 %v1031
        %1048 = vmatprep.subr.bf16.mxu0 0
        %1049 = vmatpush1.bf16.msra.mxu0 %v1030
        %1050 = vmatprep.subr.bf16.mxu0 0
        %1051 = vmatpush2.bf16.msra.mxu0 0
        %1052 = vmatprep.subr.bf16.mxu0 0
        %1053 = vmatpush2.bf16.msra.mxu0 0
        %1054 = vmatprep.subr.bf16.mxu0 0
        %1055 = vmatpush2.bf16.msra.mxu0 0
        %1056 = vmatprep.subr.bf16.mxu0 0
        %1057 = vmatpush2.bf16.msra.mxu0 0
        %1058 = vmatprep.subr.bf16.mxu0 0
        %1059 = vmatpush2.bf16.msra.mxu0 0
        %1060 = vmatprep.subr.bf16.mxu0 0
        %1061 = vmatpush2.bf16.msra.mxu0 0
        %1062 = vmatprep.subr.bf16.mxu0 0
        %1063 = vmatpush2.bf16.msra.mxu0 0
        %1064 = vmatprep.subr.bf16.mxu0 0
        %1065 = vmatpush2.bf16.msra.mxu0 0
        %1066 = vmatprep.mubr.bf16.mxu0 0
        %1067 = vmatmul.mubr.bf16.gmra.mxu0 %v624
        %v1068 = vpop.f32.mrf.mxu0
        %v1069 = vadd.f32 %v861, %v1068
        %v1070 = vpop.f32.mrf.mxu0
        %v1071 = vpop.f32.mrf.mxu0
        %v1072 = vpop.f32.mrf.mxu0
        %1073 = vdwg.mxu0
        %v1074 = vld [vmem:[%s3] sm:$0xf]
        %v1075 = vld [vmem:[%s3 + $0x4] sm:$0xf]
        %v1076 = vld [vmem:[%s3 + $0x8] sm:$0xf]
        %v1077 = vld [vmem:[%s3 + $0xc] sm:$0xf]
        %v1078 = vld [vmem:[%s3 + $0x10] sm:$0xf]
        %v1079 = vld [vmem:[%s3 + $0x14] sm:$0xf]
        %v1080 = vld [vmem:[%s3 + $0x18] sm:$0xf]
        %v1081 = vld [vmem:[%s3 + $0x1c] sm:$0xf]
        %v1082 = vld [vmem:[%s3 + $0x20] sm:$0xf]
        %v1083 = vld [vmem:[%s3 + $0x24] sm:$0xf]
        %v1084 = vld [vmem:[%s3 + $0x28] sm:$0xf]
        %v1085 = vld [vmem:[%s3 + $0x2c] sm:$0xf]
        %v1086 = vld [vmem:[%s3 + $0x30] sm:$0xf]
        %v1087 = vld [vmem:[%s3 + $0x34] sm:$0xf]
        %v1088 = vld [vmem:[%s3 + $0x38] sm:$0xf]
        %v1089 = vld [vmem:[%s3 + $0x3c] sm:$0xf]
        %v1090 = vld [vmem:[%s6] sm:$0x1]
        %v1091 = vld [vmem:[%s6 + $0x1] sm:$0x1]
        %v1092 = vld [vmem:[%s6 + $0x2] sm:$0x1]
        %v1093 = vld [vmem:[%s6 + $0x3] sm:$0x1]
        %v1098 = vlaneseq
        %v1099 = vshrl.u32 %v1098, 7
        %v1100 = vsub.s32 0, %v1099
        %v1101 = vrot.slane %v1090, %v1100
        %v1102 = vlaneseq
        %v1103 = vshrl.u32 %v1102, 7
        %v1104 = vsub.s32 0, %v1103
        %v1105 = vrot.slane %v1091, %v1104
        %v1106 = vlaneseq
        %v1107 = vshrl.u32 %v1106, 7
        %v1108 = vsub.s32 0, %v1107
        %v1109 = vrot.slane %v1092, %v1108
        %v1110 = vlaneseq
        %v1111 = vshrl.u32 %v1110, 7
        %v1112 = vsub.s32 0, %v1111
        %v1113 = vrot.slane %v1093, %v1112
        %v1122 = vunpack.c.l.b16 %v1074
        %v1123 = vunpack.c.l.b16 %v1075
        %v1124 = vunpack.c.l.b16 %v1076
        %v1125 = vunpack.c.l.b16 %v1077
        %v1126 = vpack.c.b16 %v1123, %v1122
        %v1127 = vpack.c.b16 %v1125, %v1124
        %1130 = vmatprep.subr.bf16.mxu0 0
        %1131 = vmatpush1.bf16.msra.mxu0 0
        %1132 = vmatprep.subr.bf16.mxu0 0
        %1133 = vmatpush1.bf16.msra.mxu0 0
        %1134 = vmatprep.subr.bf16.mxu0 0
        %1135 = vmatpush1.bf16.msra.mxu0 0
        %1136 = vmatprep.subr.bf16.mxu0 0
        %1137 = vmatpush1.bf16.msra.mxu0 0
        %1138 = vmatprep.subr.bf16.mxu0 0
        %1139 = vmatpush1.bf16.msra.mxu0 0
        %1140 = vmatprep.subr.bf16.mxu0 0
        %1141 = vmatpush1.bf16.msra.mxu0 0
        %1142 = vmatprep.subr.bf16.mxu0 0
        %1143 = vmatpush1.bf16.msra.mxu0 %v1127
        %1144 = vmatprep.subr.bf16.mxu0 0
        %1145 = vmatpush1.bf16.msra.mxu0 %v1126
        %1146 = vmatprep.subr.bf16.mxu0 0
        %1147 = vmatpush2.bf16.msra.mxu0 0
        %1148 = vmatprep.subr.bf16.mxu0 0
        %1149 = vmatpush2.bf16.msra.mxu0 0
        %1150 = vmatprep.subr.bf16.mxu0 0
        %1151 = vmatpush2.bf16.msra.mxu0 0
        %1152 = vmatprep.subr.bf16.mxu0 0
        %1153 = vmatpush2.bf16.msra.mxu0 0
        %1154 = vmatprep.subr.bf16.mxu0 0
        %1155 = vmatpush2.bf16.msra.mxu0 0
        %1156 = vmatprep.subr.bf16.mxu0 0
        %1157 = vmatpush2.bf16.msra.mxu0 0
        %1158 = vmatprep.subr.bf16.mxu0 0
        %1159 = vmatpush2.bf16.msra.mxu0 0
        %1160 = vmatprep.subr.bf16.mxu0 0
        %1161 = vmatpush2.bf16.msra.mxu0 0
        %1162 = vmatprep.mubr.bf16.mxu0 0
        %1163 = vmatmul.mubr.bf16.gmra.mxu0 %v624
        %v1164 = vpop.f32.mrf.mxu0
        %v1165 = vadd.f32 %v1101, %v1164
        %v1166 = vpop.f32.mrf.mxu0
        %v1167 = vpop.f32.mrf.mxu0
        %v1168 = vpop.f32.mrf.mxu0
        %1169 = vdwg.mxu0
        %v1174 = vunpack.c.l.b16 %v1078
        %v1175 = vunpack.c.l.b16 %v1079
        %v1176 = vunpack.c.l.b16 %v1080
        %v1177 = vunpack.c.l.b16 %v1081
        %v1178 = vpack.c.b16 %v1175, %v1174
        %v1179 = vpack.c.b16 %v1177, %v1176
        %1182 = vmatprep.subr.bf16.mxu0 0
        %1183 = vmatpush1.bf16.msra.mxu0 0
        %1184 = vmatprep.subr.bf16.mxu0 0
        %1185 = vmatpush1.bf16.msra.mxu0 0
        %1186 = vmatprep.subr.bf16.mxu0 0
        %1187 = vmatpush1.bf16.msra.mxu0 0
        %1188 = vmatprep.subr.bf16.mxu0 0
        %1189 = vmatpush1.bf16.msra.mxu0 0
        %1190 = vmatprep.subr.bf16.mxu0 0
        %1191 = vmatpush1.bf16.msra.mxu0 0
        %1192 = vmatprep.subr.bf16.mxu0 0
        %1193 = vmatpush1.bf16.msra.mxu0 0
        %1194 = vmatprep.subr.bf16.mxu0 0
        %1195 = vmatpush1.bf16.msra.mxu0 %v1179
        %1196 = vmatprep.subr.bf16.mxu0 0
        %1197 = vmatpush1.bf16.msra.mxu0 %v1178
        %1198 = vmatprep.subr.bf16.mxu0 0
        %1199 = vmatpush2.bf16.msra.mxu0 0
        %1200 = vmatprep.subr.bf16.mxu0 0
        %1201 = vmatpush2.bf16.msra.mxu0 0
        %1202 = vmatprep.subr.bf16.mxu0 0
        %1203 = vmatpush2.bf16.msra.mxu0 0
        %1204 = vmatprep.subr.bf16.mxu0 0
        %1205 = vmatpush2.bf16.msra.mxu0 0
        %1206 = vmatprep.subr.bf16.mxu0 0
        %1207 = vmatpush2.bf16.msra.mxu0 0
        %1208 = vmatprep.subr.bf16.mxu0 0
        %1209 = vmatpush2.bf16.msra.mxu0 0
        %1210 = vmatprep.subr.bf16.mxu0 0
        %1211 = vmatpush2.bf16.msra.mxu0 0
        %1212 = vmatprep.subr.bf16.mxu0 0
        %1213 = vmatpush2.bf16.msra.mxu0 0
        %1214 = vmatprep.mubr.bf16.mxu0 0
        %1215 = vmatmul.mubr.bf16.gmra.mxu0 %v624
        %v1216 = vpop.f32.mrf.mxu0
        %v1217 = vadd.f32 %v1105, %v1216
        %v1218 = vpop.f32.mrf.mxu0
        %v1219 = vpop.f32.mrf.mxu0
        %v1220 = vpop.f32.mrf.mxu0
        %1221 = vdwg.mxu0
        %v1226 = vunpack.c.l.b16 %v1082
        %v1227 = vunpack.c.l.b16 %v1083
        %v1228 = vunpack.c.l.b16 %v1084
        %v1229 = vunpack.c.l.b16 %v1085
        %v1230 = vpack.c.b16 %v1227, %v1226
        %v1231 = vpack.c.b16 %v1229, %v1228
        %1234 = vmatprep.subr.bf16.mxu0 0
        %1235 = vmatpush1.bf16.msra.mxu0 0
        %1236 = vmatprep.subr.bf16.mxu0 0
        %1237 = vmatpush1.bf16.msra.mxu0 0
        %1238 = vmatprep.subr.bf16.mxu0 0
        %1239 = vmatpush1.bf16.msra.mxu0 0
        %1240 = vmatprep.subr.bf16.mxu0 0
        %1241 = vmatpush1.bf16.msra.mxu0 0
        %1242 = vmatprep.subr.bf16.mxu0 0
        %1243 = vmatpush1.bf16.msra.mxu0 0
        %1244 = vmatprep.subr.bf16.mxu0 0
        %1245 = vmatpush1.bf16.msra.mxu0 0
        %1246 = vmatprep.subr.bf16.mxu0 0
        %1247 = vmatpush1.bf16.msra.mxu0 %v1231
        %1248 = vmatprep.subr.bf16.mxu0 0
        %1249 = vmatpush1.bf16.msra.mxu0 %v1230
        %1250 = vmatprep.subr.bf16.mxu0 0
        %1251 = vmatpush2.bf16.msra.mxu0 0
        %1252 = vmatprep.subr.bf16.mxu0 0
        %1253 = vmatpush2.bf16.msra.mxu0 0
        %1254 = vmatprep.subr.bf16.mxu0 0
        %1255 = vmatpush2.bf16.msra.mxu0 0
        %1256 = vmatprep.subr.bf16.mxu0 0
        %1257 = vmatpush2.bf16.msra.mxu0 0
        %1258 = vmatprep.subr.bf16.mxu0 0
        %1259 = vmatpush2.bf16.msra.mxu0 0
        %1260 = vmatprep.subr.bf16.mxu0 0
        %1261 = vmatpush2.bf16.msra.mxu0 0
        %1262 = vmatprep.subr.bf16.mxu0 0
        %1263 = vmatpush2.bf16.msra.mxu0 0
        %1264 = vmatprep.subr.bf16.mxu0 0
        %1265 = vmatpush2.bf16.msra.mxu0 0
        %1266 = vmatprep.mubr.bf16.mxu0 0
        %1267 = vmatmul.mubr.bf16.gmra.mxu0 %v624
        %v1268 = vpop.f32.mrf.mxu0
        %v1269 = vadd.f32 %v1109, %v1268
        %v1270 = vpop.f32.mrf.mxu0
        %v1271 = vpop.f32.mrf.mxu0
        %v1272 = vpop.f32.mrf.mxu0
        %1273 = vdwg.mxu0
        %v1278 = vunpack.c.l.b16 %v1086
        %v1279 = vunpack.c.l.b16 %v1087
        %v1280 = vunpack.c.l.b16 %v1088
        %v1281 = vunpack.c.l.b16 %v1089
        %v1282 = vpack.c.b16 %v1279, %v1278
        %v1283 = vpack.c.b16 %v1281, %v1280
        %1286 = vmatprep.subr.bf16.mxu0 0
        %1287 = vmatpush1.bf16.msra.mxu0 0
        %1288 = vmatprep.subr.bf16.mxu0 0
        %1289 = vmatpush1.bf16.msra.mxu0 0
        %1290 = vmatprep.subr.bf16.mxu0 0
        %1291 = vmatpush1.bf16.msra.mxu0 0
        %1292 = vmatprep.subr.bf16.mxu0 0
        %1293 = vmatpush1.bf16.msra.mxu0 0
        %1294 = vmatprep.subr.bf16.mxu0 0
        %1295 = vmatpush1.bf16.msra.mxu0 0
        %1296 = vmatprep.subr.bf16.mxu0 0
        %1297 = vmatpush1.bf16.msra.mxu0 0
        %1298 = vmatprep.subr.bf16.mxu0 0
        %1299 = vmatpush1.bf16.msra.mxu0 %v1283
        %1300 = vmatprep.subr.bf16.mxu0 0
        %1301 = vmatpush1.bf16.msra.mxu0 %v1282
        %1302 = vmatprep.subr.bf16.mxu0 0
        %1303 = vmatpush2.bf16.msra.mxu0 0
        %1304 = vmatprep.subr.bf16.mxu0 0
        %1305 = vmatpush2.bf16.msra.mxu0 0
        %1306 = vmatprep.subr.bf16.mxu0 0
        %1307 = vmatpush2.bf16.msra.mxu0 0
        %1308 = vmatprep.subr.bf16.mxu0 0
        %1309 = vmatpush2.bf16.msra.mxu0 0
        %1310 = vmatprep.subr.bf16.mxu0 0
        %1311 = vmatpush2.bf16.msra.mxu0 0
        %1312 = vmatprep.subr.bf16.mxu0 0
        %1313 = vmatpush2.bf16.msra.mxu0 0
        %1314 = vmatprep.subr.bf16.mxu0 0
        %1315 = vmatpush2.bf16.msra.mxu0 0
        %1316 = vmatprep.subr.bf16.mxu0 0
        %1317 = vmatpush2.bf16.msra.mxu0 0
        %1318 = vmatprep.mubr.bf16.mxu0 0
        %1319 = vmatmul.mubr.bf16.gmra.mxu0 %v624
        %v1320 = vpop.f32.mrf.mxu0
        %v1321 = vadd.f32 %v1113, %v1320
        %v1322 = vpop.f32.mrf.mxu0
        %v1323 = vpop.f32.mrf.mxu0
        %v1324 = vpop.f32.mrf.mxu0
        %1325 = vdwg.mxu0
        %v1326 = vpack.c.bf16 %v661, %v661
        %v1327 = vpack.c.bf16 %v713, %v713
        %v1328 = vpack.c.bf16 %v765, %v765
        %v1329 = vpack.c.bf16 %v817, %v817
        %v1330 = vpack.c.bf16 %v913, %v913
        %v1331 = vpack.c.bf16 %v965, %v965
        %v1332 = vpack.c.bf16 %v1017, %v1017
        %v1333 = vpack.c.bf16 %v1069, %v1069
        %vm1334 = vcmask 64512
        %v1336 = vsel %vm1334, %v1326, 0
        %v1339 = vsel %vm1334, %v1330, 0
        %1341 = vmatprep.subr.bf16.mxu0 0
        %1342 = vmatpush1.bf16.xpose.msra.mxu0 0
        %1343 = vmatprep.subr.bf16.mxu0 0
        %1344 = vmatpush1.bf16.xpose.msra.mxu0 0
        %1345 = vmatprep.subr.bf16.mxu0 0
        %1346 = vmatpush1.bf16.xpose.msra.mxu0 0
        %1347 = vmatprep.subr.bf16.mxu0 0
        %1348 = vmatpush1.bf16.xpose.msra.mxu0 0
        %1349 = vmatprep.subr.bf16.mxu0 0
        %1350 = vmatpush1.bf16.xpose.msra.mxu0 0
        %1351 = vmatprep.subr.bf16.mxu0 0
        %1352 = vmatpush1.bf16.xpose.msra.mxu0 0
        %1353 = vmatprep.subr.bf16.mxu0 0
        %1354 = vmatpush1.bf16.xpose.msra.mxu0 0
        %1355 = vmatprep.subr.bf16.mxu0 0
        %1356 = vmatpush1.bf16.xpose.msra.mxu0 %v1339
        %1357 = vmatprep.subr.bf16.mxu0 0
        %1358 = vmatpush2.bf16.xpose.msra.mxu0 0
        %1359 = vmatprep.subr.bf16.mxu0 0
        %1360 = vmatpush2.bf16.xpose.msra.mxu0 0
        %1361 = vmatprep.subr.bf16.mxu0 0
        %1362 = vmatpush2.bf16.xpose.msra.mxu0 0
        %1363 = vmatprep.subr.bf16.mxu0 0
        %1364 = vmatpush2.bf16.xpose.msra.mxu0 0
        %1365 = vmatprep.subr.bf16.mxu0 0
        %1366 = vmatpush2.bf16.xpose.msra.mxu0 0
        %1367 = vmatprep.subr.bf16.mxu0 0
        %1368 = vmatpush2.bf16.xpose.msra.mxu0 0
        %1369 = vmatprep.subr.bf16.mxu0 0
        %1370 = vmatpush2.bf16.xpose.msra.mxu0 0
        %1371 = vmatprep.subr.bf16.mxu0 0
        %1372 = vmatpush2.bf16.xpose.msra.mxu0 0
        %1373 = vmatprep.mubr.bf16.mxu0 0
        %1374 = vmatmul.mubr.bf16.gmra.mxu0 %v1336
        %v1375 = vpop.f32.mrf.mxu0
        %v1376 = vadd.f32 0.0, %v1375
        %v1377 = vpop.f32.mrf.mxu0
        %v1378 = vpop.f32.mrf.mxu0
        %v1379 = vpop.f32.mrf.mxu0
        %1380 = vdwg.mxu0
        %v1382 = vsel %vm1334, %v1327, 0
        %v1385 = vsel %vm1334, %v1331, 0
        %1387 = vmatprep.subr.bf16.mxu0 0
        %1388 = vmatpush1.bf16.xpose.msra.mxu0 0
        %1389 = vmatprep.subr.bf16.mxu0 0
        %1390 = vmatpush1.bf16.xpose.msra.mxu0 0
        %1391 = vmatprep.subr.bf16.mxu0 0
        %1392 = vmatpush1.bf16.xpose.msra.mxu0 0
        %1393 = vmatprep.subr.bf16.mxu0 0
        %1394 = vmatpush1.bf16.xpose.msra.mxu0 0
        %1395 = vmatprep.subr.bf16.mxu0 0
        %1396 = vmatpush1.bf16.xpose.msra.mxu0 0
        %1397 = vmatprep.subr.bf16.mxu0 0
        %1398 = vmatpush1.bf16.xpose.msra.mxu0 0
        %1399 = vmatprep.subr.bf16.mxu0 0
        %1400 = vmatpush1.bf16.xpose.msra.mxu0 0
        %1401 = vmatprep.subr.bf16.mxu0 0
        %1402 = vmatpush1.bf16.xpose.msra.mxu0 %v1385
        %1403 = vmatprep.subr.bf16.mxu0 0
        %1404 = vmatpush2.bf16.xpose.msra.mxu0 0
        %1405 = vmatprep.subr.bf16.mxu0 0
        %1406 = vmatpush2.bf16.xpose.msra.mxu0 0
        %1407 = vmatprep.subr.bf16.mxu0 0
        %1408 = vmatpush2.bf16.xpose.msra.mxu0 0
        %1409 = vmatprep.subr.bf16.mxu0 0
        %1410 = vmatpush2.bf16.xpose.msra.mxu0 0
        %1411 = vmatprep.subr.bf16.mxu0 0
        %1412 = vmatpush2.bf16.xpose.msra.mxu0 0
        %1413 = vmatprep.subr.bf16.mxu0 0
        %1414 = vmatpush2.bf16.xpose.msra.mxu0 0
        %1415 = vmatprep.subr.bf16.mxu0 0
        %1416 = vmatpush2.bf16.xpose.msra.mxu0 0
        %1417 = vmatprep.subr.bf16.mxu0 0
        %1418 = vmatpush2.bf16.xpose.msra.mxu0 0
        %1419 = vmatprep.mubr.bf16.mxu0 0
        %1420 = vmatmul.mubr.bf16.gmra.mxu0 %v1382
        %v1421 = vpop.f32.mrf.mxu0
        %v1422 = vadd.f32 0.0, %v1421
        %v1423 = vpop.f32.mrf.mxu0
        %v1424 = vpop.f32.mrf.mxu0
        %v1425 = vpop.f32.mrf.mxu0
        %1426 = vdwg.mxu0
        %v1428 = vsel %vm1334, %v1328, 0
        %v1431 = vsel %vm1334, %v1332, 0
        %1433 = vmatprep.subr.bf16.mxu0 0
        %1434 = vmatpush1.bf16.xpose.msra.mxu0 0
        %1435 = vmatprep.subr.bf16.mxu0 0
        %1436 = vmatpush1.bf16.xpose.msra.mxu0 0
        %1437 = vmatprep.subr.bf16.mxu0 0
        %1438 = vmatpush1.bf16.xpose.msra.mxu0 0
        %1439 = vmatprep.subr.bf16.mxu0 0
        %1440 = vmatpush1.bf16.xpose.msra.mxu0 0
        %1441 = vmatprep.subr.bf16.mxu0 0
        %1442 = vmatpush1.bf16.xpose.msra.mxu0 0
        %1443 = vmatprep.subr.bf16.mxu0 0
        %1444 = vmatpush1.bf16.xpose.msra.mxu0 0
        %1445 = vmatprep.subr.bf16.mxu0 0
        %1446 = vmatpush1.bf16.xpose.msra.mxu0 0
        %1447 = vmatprep.subr.bf16.mxu0 0
        %1448 = vmatpush1.bf16.xpose.msra.mxu0 %v1431
        %1449 = vmatprep.subr.bf16.mxu0 0
        %1450 = vmatpush2.bf16.xpose.msra.mxu0 0
        %1451 = vmatprep.subr.bf16.mxu0 0
        %1452 = vmatpush2.bf16.xpose.msra.mxu0 0
        %1453 = vmatprep.subr.bf16.mxu0 0
        %1454 = vmatpush2.bf16.xpose.msra.mxu0 0
        %1455 = vmatprep.subr.bf16.mxu0 0
        %1456 = vmatpush2.bf16.xpose.msra.mxu0 0
        %1457 = vmatprep.subr.bf16.mxu0 0
        %1458 = vmatpush2.bf16.xpose.msra.mxu0 0
        %1459 = vmatprep.subr.bf16.mxu0 0
        %1460 = vmatpush2.bf16.xpose.msra.mxu0 0
        %1461 = vmatprep.subr.bf16.mxu0 0
        %1462 = vmatpush2.bf16.xpose.msra.mxu0 0
        %1463 = vmatprep.subr.bf16.mxu0 0
        %1464 = vmatpush2.bf16.xpose.msra.mxu0 0
        %1465 = vmatprep.mubr.bf16.mxu0 0
        %1466 = vmatmul.mubr.bf16.gmra.mxu0 %v1428
        %v1467 = vpop.f32.mrf.mxu0
        %v1468 = vadd.f32 0.0, %v1467
        %v1469 = vpop.f32.mrf.mxu0
        %v1470 = vpop.f32.mrf.mxu0
        %v1471 = vpop.f32.mrf.mxu0
        %1472 = vdwg.mxu0
        %v1474 = vsel %vm1334, %v1329, 0
        %v1477 = vsel %vm1334, %v1333, 0
        %1479 = vmatprep.subr.bf16.mxu0 0
        %1480 = vmatpush1.bf16.xpose.msra.mxu0 0
        %1481 = vmatprep.subr.bf16.mxu0 0
        %1482 = vmatpush1.bf16.xpose.msra.mxu0 0
        %1483 = vmatprep.subr.bf16.mxu0 0
        %1484 = vmatpush1.bf16.xpose.msra.mxu0 0
        %1485 = vmatprep.subr.bf16.mxu0 0
        %1486 = vmatpush1.bf16.xpose.msra.mxu0 0
        %1487 = vmatprep.subr.bf16.mxu0 0
        %1488 = vmatpush1.bf16.xpose.msra.mxu0 0
        %1489 = vmatprep.subr.bf16.mxu0 0
        %1490 = vmatpush1.bf16.xpose.msra.mxu0 0
        %1491 = vmatprep.subr.bf16.mxu0 0
        %1492 = vmatpush1.bf16.xpose.msra.mxu0 0
        %1493 = vmatprep.subr.bf16.mxu0 0
        %1494 = vmatpush1.bf16.xpose.msra.mxu0 %v1477
        %1495 = vmatprep.subr.bf16.mxu0 0
        %1496 = vmatpush2.bf16.xpose.msra.mxu0 0
        %1497 = vmatprep.subr.bf16.mxu0 0
        %1498 = vmatpush2.bf16.xpose.msra.mxu0 0
        %1499 = vmatprep.subr.bf16.mxu0 0
        %1500 = vmatpush2.bf16.xpose.msra.mxu0 0
        %1501 = vmatprep.subr.bf16.mxu0 0
        %1502 = vmatpush2.bf16.xpose.msra.mxu0 0
        %1503 = vmatprep.subr.bf16.mxu0 0
        %1504 = vmatpush2.bf16.xpose.msra.mxu0 0
        %1505 = vmatprep.subr.bf16.mxu0 0
        %1506 = vmatpush2.bf16.xpose.msra.mxu0 0
        %1507 = vmatprep.subr.bf16.mxu0 0
        %1508 = vmatpush2.bf16.xpose.msra.mxu0 0
        %1509 = vmatprep.subr.bf16.mxu0 0
        %1510 = vmatpush2.bf16.xpose.msra.mxu0 0
        %1511 = vmatprep.mubr.bf16.mxu0 0
        %1512 = vmatmul.mubr.bf16.gmra.mxu0 %v1474
        %v1513 = vpop.f32.mrf.mxu0
        %v1514 = vadd.f32 0.0, %v1513
        %v1515 = vpop.f32.mrf.mxu0
        %v1516 = vpop.f32.mrf.mxu0
        %v1517 = vpop.f32.mrf.mxu0
        %1518 = vdwg.mxu0
        %v1519 = vsel %vm1334, %v1376, -inf
        %1520 = vmax.xlane.f32.xlu0 %v1519
        %v1521 = vpop.xlane.xlu0 %1520
        %v1522 = vsel %vm1334, %v1422, -inf
        %1523 = vmax.xlane.f32.xlu0 %v1522
        %v1524 = vpop.xlane.xlu0 %1523
        %v1525 = vsel %vm1334, %v1468, -inf
        %1526 = vmax.xlane.f32.xlu0 %v1525
        %v1527 = vpop.xlane.xlu0 %1526
        %v1528 = vsel %vm1334, %v1514, -inf
        %1529 = vmax.xlane.f32.xlu0 %v1528
        %v1530 = vpop.xlane.xlu0 %1529
        %v1531 = vsub.f32 %v1376, %v1521
        %v1532 = vsub.f32 %v1422, %v1524
        %v1533 = vsub.f32 %v1468, %v1527
        %v1534 = vsub.f32 %v1514, %v1530
        %v1535 = vmul.f32 %v1531, 1.442695
        %v1536 = vpow.pop %v1535
        %v1537 = vmul.f32 %v1532, 1.442695
        %v1538 = vpow.pop %v1537
        %v1539 = vmul.f32 %v1533, 1.442695
        %v1540 = vpow.pop %v1539
        %v1541 = vmul.f32 %v1534, 1.442695
        %v1542 = vpow.pop %v1541
        %v1543 = vsel %vm1334, %v1536, 0.0
        %1544 = vadd.xlane.f32.xlu0 %v1543
        %v1545 = vpop.xlane.xlu0 %1544
        %v1546 = vsel %vm1334, %v1538, 0.0
        %1547 = vadd.xlane.f32.xlu0 %v1546
        %v1548 = vpop.xlane.xlu0 %1547
        %v1549 = vsel %vm1334, %v1540, 0.0
        %1550 = vadd.xlane.f32.xlu0 %v1549
        %v1551 = vpop.xlane.xlu0 %1550
        %v1552 = vsel %vm1334, %v1542, 0.0
        %1553 = vadd.xlane.f32.xlu0 %v1552
        %v1554 = vpop.xlane.xlu0 %1553
        %v1555 = vrcp.pop %v1545
        %v1556 = vrcp.pop %v1548
        %v1557 = vrcp.pop %v1551
        %v1558 = vrcp.pop %v1554
        %v1559 = vmul.f32 %v1536, %v1555
        %v1560 = vmul.f32 %v1538, %v1556
        %v1561 = vmul.f32 %v1540, %v1557
        %v1562 = vmul.f32 %v1542, %v1558
        %v1563 = vpack.c.bf16 %v1559, %v1559
        %v1564 = vpack.c.bf16 %v1560, %v1560
        %v1565 = vpack.c.bf16 %v1561, %v1561
        %v1566 = vpack.c.bf16 %v1562, %v1562
        %v1567 = vpack.c.bf16 %v1165, %v1165
        %v1568 = vpack.c.bf16 %v1217, %v1217
        %v1569 = vpack.c.bf16 %v1269, %v1269
        %v1570 = vpack.c.bf16 %v1321, %v1321
        %v1572 = vsel %vm1334, %v1563, 0
        %vm1574 = vcmask 1043456
        %v1576 = vsel %vm1574, %v1567, 0
        %1578 = vmatprep.subr.bf16.mxu0 0
        %1579 = vmatpush1.bf16.msra.mxu0 0
        %1580 = vmatprep.subr.bf16.mxu0 0
        %1581 = vmatpush1.bf16.msra.mxu0 0
        %1582 = vmatprep.subr.bf16.mxu0 0
        %1583 = vmatpush1.bf16.msra.mxu0 0
        %1584 = vmatprep.subr.bf16.mxu0 0
        %1585 = vmatpush1.bf16.msra.mxu0 0
        %1586 = vmatprep.subr.bf16.mxu0 0
        %1587 = vmatpush1.bf16.msra.mxu0 0
        %1588 = vmatprep.subr.bf16.mxu0 0
        %1589 = vmatpush1.bf16.msra.mxu0 0
        %1590 = vmatprep.subr.bf16.mxu0 0
        %1591 = vmatpush1.bf16.msra.mxu0 0
        %1592 = vmatprep.subr.bf16.mxu0 0
        %1593 = vmatpush1.bf16.msra.mxu0 %v1576
        %1594 = vmatprep.subr.bf16.mxu0 0
        %1595 = vmatpush2.bf16.msra.mxu0 0
        %1596 = vmatprep.subr.bf16.mxu0 0
        %1597 = vmatpush2.bf16.msra.mxu0 0
        %1598 = vmatprep.subr.bf16.mxu0 0
        %1599 = vmatpush2.bf16.msra.mxu0 0
        %1600 = vmatprep.subr.bf16.mxu0 0
        %1601 = vmatpush2.bf16.msra.mxu0 0
        %1602 = vmatprep.subr.bf16.mxu0 0
        %1603 = vmatpush2.bf16.msra.mxu0 0
        %1604 = vmatprep.subr.bf16.mxu0 0
        %1605 = vmatpush2.bf16.msra.mxu0 0
        %1606 = vmatprep.subr.bf16.mxu0 0
        %1607 = vmatpush2.bf16.msra.mxu0 0
        %1608 = vmatprep.subr.bf16.mxu0 0
        %1609 = vmatpush2.bf16.msra.mxu0 0
        %1610 = vmatprep.mubr.bf16.mxu0 0
        %1611 = vmatmul.mubr.bf16.gmra.mxu0 %v1572
        %v1612 = vpop.f32.mrf.mxu0
        %v1613 = vadd.f32 0.0, %v1612
        %v1614 = vpop.f32.mrf.mxu0
        %v1615 = vpop.f32.mrf.mxu0
        %v1616 = vpop.f32.mrf.mxu0
        %1617 = vdwg.mxu0
        %v1619 = vsel %vm1334, %v1564, 0
        %v1622 = vsel %vm1574, %v1568, 0
        %1624 = vmatprep.subr.bf16.mxu0 0
        %1625 = vmatpush1.bf16.msra.mxu0 0
        %1626 = vmatprep.subr.bf16.mxu0 0
        %1627 = vmatpush1.bf16.msra.mxu0 0
        %1628 = vmatprep.subr.bf16.mxu0 0
        %1629 = vmatpush1.bf16.msra.mxu0 0
        %1630 = vmatprep.subr.bf16.mxu0 0
        %1631 = vmatpush1.bf16.msra.mxu0 0
        %1632 = vmatprep.subr.bf16.mxu0 0
        %1633 = vmatpush1.bf16.msra.mxu0 0
        %1634 = vmatprep.subr.bf16.mxu0 0
        %1635 = vmatpush1.bf16.msra.mxu0 0
        %1636 = vmatprep.subr.bf16.mxu0 0
        %1637 = vmatpush1.bf16.msra.mxu0 0
        %1638 = vmatprep.subr.bf16.mxu0 0
        %1639 = vmatpush1.bf16.msra.mxu0 %v1622
        %1640 = vmatprep.subr.bf16.mxu0 0
        %1641 = vmatpush2.bf16.msra.mxu0 0
        %1642 = vmatprep.subr.bf16.mxu0 0
        %1643 = vmatpush2.bf16.msra.mxu0 0
        %1644 = vmatprep.subr.bf16.mxu0 0
        %1645 = vmatpush2.bf16.msra.mxu0 0
        %1646 = vmatprep.subr.bf16.mxu0 0
        %1647 = vmatpush2.bf16.msra.mxu0 0
        %1648 = vmatprep.subr.bf16.mxu0 0
        %1649 = vmatpush2.bf16.msra.mxu0 0
        %1650 = vmatprep.subr.bf16.mxu0 0
        %1651 = vmatpush2.bf16.msra.mxu0 0
        %1652 = vmatprep.subr.bf16.mxu0 0
        %1653 = vmatpush2.bf16.msra.mxu0 0
        %1654 = vmatprep.subr.bf16.mxu0 0
        %1655 = vmatpush2.bf16.msra.mxu0 0
        %1656 = vmatprep.mubr.bf16.mxu0 0
        %1657 = vmatmul.mubr.bf16.gmra.mxu0 %v1619
        %v1658 = vpop.f32.mrf.mxu0
        %v1659 = vadd.f32 0.0, %v1658
        %v1660 = vpop.f32.mrf.mxu0
        %v1661 = vpop.f32.mrf.mxu0
        %v1662 = vpop.f32.mrf.mxu0
        %1663 = vdwg.mxu0
        %v1665 = vsel %vm1334, %v1565, 0
        %v1668 = vsel %vm1574, %v1569, 0
        %1670 = vmatprep.subr.bf16.mxu0 0
        %1671 = vmatpush1.bf16.msra.mxu0 0
        %1672 = vmatprep.subr.bf16.mxu0 0
        %1673 = vmatpush1.bf16.msra.mxu0 0
        %1674 = vmatprep.subr.bf16.mxu0 0
        %1675 = vmatpush1.bf16.msra.mxu0 0
        %1676 = vmatprep.subr.bf16.mxu0 0
        %1677 = vmatpush1.bf16.msra.mxu0 0
        %1678 = vmatprep.subr.bf16.mxu0 0
        %1679 = vmatpush1.bf16.msra.mxu0 0
        %1680 = vmatprep.subr.bf16.mxu0 0
        %1681 = vmatpush1.bf16.msra.mxu0 0
        %1682 = vmatprep.subr.bf16.mxu0 0
        %1683 = vmatpush1.bf16.msra.mxu0 0
        %1684 = vmatprep.subr.bf16.mxu0 0
        %1685 = vmatpush1.bf16.msra.mxu0 %v1668
        %1686 = vmatprep.subr.bf16.mxu0 0
        %1687 = vmatpush2.bf16.msra.mxu0 0
        %1688 = vmatprep.subr.bf16.mxu0 0
        %1689 = vmatpush2.bf16.msra.mxu0 0
        %1690 = vmatprep.subr.bf16.mxu0 0
        %1691 = vmatpush2.bf16.msra.mxu0 0
        %1692 = vmatprep.subr.bf16.mxu0 0
        %1693 = vmatpush2.bf16.msra.mxu0 0
        %1694 = vmatprep.subr.bf16.mxu0 0
        %1695 = vmatpush2.bf16.msra.mxu0 0
        %1696 = vmatprep.subr.bf16.mxu0 0
        %1697 = vmatpush2.bf16.msra.mxu0 0
        %1698 = vmatprep.subr.bf16.mxu0 0
        %1699 = vmatpush2.bf16.msra.mxu0 0
        %1700 = vmatprep.subr.bf16.mxu0 0
        %1701 = vmatpush2.bf16.msra.mxu0 0
        %1702 = vmatprep.mubr.bf16.mxu0 0
        %1703 = vmatmul.mubr.bf16.gmra.mxu0 %v1665
        %v1704 = vpop.f32.mrf.mxu0
        %v1705 = vadd.f32 0.0, %v1704
        %v1706 = vpop.f32.mrf.mxu0
        %v1707 = vpop.f32.mrf.mxu0
        %v1708 = vpop.f32.mrf.mxu0
        %1709 = vdwg.mxu0
        %v1711 = vsel %vm1334, %v1566, 0
        %v1714 = vsel %vm1574, %v1570, 0
        %1716 = vmatprep.subr.bf16.mxu0 0
        %1717 = vmatpush1.bf16.msra.mxu0 0
        %1718 = vmatprep.subr.bf16.mxu0 0
        %1719 = vmatpush1.bf16.msra.mxu0 0
        %1720 = vmatprep.subr.bf16.mxu0 0
        %1721 = vmatpush1.bf16.msra.mxu0 0
        %1722 = vmatprep.subr.bf16.mxu0 0
        %1723 = vmatpush1.bf16.msra.mxu0 0
        %1724 = vmatprep.subr.bf16.mxu0 0
        %1725 = vmatpush1.bf16.msra.mxu0 0
        %1726 = vmatprep.subr.bf16.mxu0 0
        %1727 = vmatpush1.bf16.msra.mxu0 0
        %1728 = vmatprep.subr.bf16.mxu0 0
        %1729 = vmatpush1.bf16.msra.mxu0 0
        %1730 = vmatprep.subr.bf16.mxu0 0
        %1731 = vmatpush1.bf16.msra.mxu0 %v1714
        %1732 = vmatprep.subr.bf16.mxu0 0
        %1733 = vmatpush2.bf16.msra.mxu0 0
        %1734 = vmatprep.subr.bf16.mxu0 0
        %1735 = vmatpush2.bf16.msra.mxu0 0
        %1736 = vmatprep.subr.bf16.mxu0 0
        %1737 = vmatpush2.bf16.msra.mxu0 0
        %1738 = vmatprep.subr.bf16.mxu0 0
        %1739 = vmatpush2.bf16.msra.mxu0 0
        %1740 = vmatprep.subr.bf16.mxu0 0
        %1741 = vmatpush2.bf16.msra.mxu0 0
        %1742 = vmatprep.subr.bf16.mxu0 0
        %1743 = vmatpush2.bf16.msra.mxu0 0
        %1744 = vmatprep.subr.bf16.mxu0 0
        %1745 = vmatpush2.bf16.msra.mxu0 0
        %1746 = vmatprep.subr.bf16.mxu0 0
        %1747 = vmatpush2.bf16.msra.mxu0 0
        %1748 = vmatprep.mubr.bf16.mxu0 0
        %1749 = vmatmul.mubr.bf16.gmra.mxu0 %v1711
        %v1750 = vpop.f32.mrf.mxu0
        %v1751 = vadd.f32 0.0, %v1750
        %v1752 = vpop.f32.mrf.mxu0
        %v1753 = vpop.f32.mrf.mxu0
        %v1754 = vpop.f32.mrf.mxu0
        %1755 = vdwg.mxu0
        %v1756 = vpack.c.bf16 %v1613, %v1613
        %v1757 = vpack.c.bf16 %v1659, %v1659
        %v1758 = vpack.c.bf16 %v1705, %v1705
        %v1759 = vpack.c.bf16 %v1751, %v1751
        %v1760 = vld [vmem:[%s7] sm:$0xf]
        %v1761 = vld [vmem:[%s7 + $0x4] sm:$0xf]
        %v1762 = vld [vmem:[%s7 + $0x8] sm:$0xf]
        %v1763 = vld [vmem:[%s7 + $0xc] sm:$0xf]
        %v1765 = vsel %vm1334, %v1756, 0
        %v1768 = vsel %vm1574, %v1760, 0
        %1770 = vmatprep.subr.bf16.mxu0 0
        %1771 = vmatpush1.bf16.msra.mxu0 0
        %1772 = vmatprep.subr.bf16.mxu0 0
        %1773 = vmatpush1.bf16.msra.mxu0 0
        %1774 = vmatprep.subr.bf16.mxu0 0
        %1775 = vmatpush1.bf16.msra.mxu0 0
        %1776 = vmatprep.subr.bf16.mxu0 0
        %1777 = vmatpush1.bf16.msra.mxu0 0
        %1778 = vmatprep.subr.bf16.mxu0 0
        %1779 = vmatpush1.bf16.msra.mxu0 0
        %1780 = vmatprep.subr.bf16.mxu0 0
        %1781 = vmatpush1.bf16.msra.mxu0 0
        %1782 = vmatprep.subr.bf16.mxu0 0
        %1783 = vmatpush1.bf16.msra.mxu0 0
        %1784 = vmatprep.subr.bf16.mxu0 0
        %1785 = vmatpush1.bf16.msra.mxu0 %v1768
        %1786 = vmatprep.subr.bf16.mxu0 0
        %1787 = vmatpush2.bf16.msra.mxu0 0
        %1788 = vmatprep.subr.bf16.mxu0 0
        %1789 = vmatpush2.bf16.msra.mxu0 0
        %1790 = vmatprep.subr.bf16.mxu0 0
        %1791 = vmatpush2.bf16.msra.mxu0 0
        %1792 = vmatprep.subr.bf16.mxu0 0
        %1793 = vmatpush2.bf16.msra.mxu0 0
        %1794 = vmatprep.subr.bf16.mxu0 0
        %1795 = vmatpush2.bf16.msra.mxu0 0
        %1796 = vmatprep.subr.bf16.mxu0 0
        %1797 = vmatpush2.bf16.msra.mxu0 0
        %1798 = vmatprep.subr.bf16.mxu0 0
        %1799 = vmatpush2.bf16.msra.mxu0 0
        %1800 = vmatprep.subr.bf16.mxu0 0
        %1801 = vmatpush2.bf16.msra.mxu0 0
        %1802 = vmatprep.mubr.bf16.mxu0 0
        %1803 = vmatmul.mubr.bf16.gmra.mxu0 %v1765
        %v1804 = vpop.f32.mrf.mxu0
        %v1805 = vadd.f32 0.0, %v1804
        %v1806 = vpop.f32.mrf.mxu0
        %v1807 = vpop.f32.mrf.mxu0
        %v1808 = vpop.f32.mrf.mxu0
        %1809 = vdwg.mxu0
        %v1811 = vsel %vm1334, %v1757, 0
        %v1814 = vsel %vm1574, %v1761, 0
        %1816 = vmatprep.subr.bf16.mxu0 0
        %1817 = vmatpush1.bf16.msra.mxu0 0
        %1818 = vmatprep.subr.bf16.mxu0 0
        %1819 = vmatpush1.bf16.msra.mxu0 0
        %1820 = vmatprep.subr.bf16.mxu0 0
        %1821 = vmatpush1.bf16.msra.mxu0 0
        %1822 = vmatprep.subr.bf16.mxu0 0
        %1823 = vmatpush1.bf16.msra.mxu0 0
        %1824 = vmatprep.subr.bf16.mxu0 0
        %1825 = vmatpush1.bf16.msra.mxu0 0
        %1826 = vmatprep.subr.bf16.mxu0 0
        %1827 = vmatpush1.bf16.msra.mxu0 0
        %1828 = vmatprep.subr.bf16.mxu0 0
        %1829 = vmatpush1.bf16.msra.mxu0 0
        %1830 = vmatprep.subr.bf16.mxu0 0
        %1831 = vmatpush1.bf16.msra.mxu0 %v1814
        %1832 = vmatprep.subr.bf16.mxu0 0
        %1833 = vmatpush2.bf16.msra.mxu0 0
        %1834 = vmatprep.subr.bf16.mxu0 0
        %1835 = vmatpush2.bf16.msra.mxu0 0
        %1836 = vmatprep.subr.bf16.mxu0 0
        %1837 = vmatpush2.bf16.msra.mxu0 0
        %1838 = vmatprep.subr.bf16.mxu0 0
        %1839 = vmatpush2.bf16.msra.mxu0 0
        %1840 = vmatprep.subr.bf16.mxu0 0
        %1841 = vmatpush2.bf16.msra.mxu0 0
        %1842 = vmatprep.subr.bf16.mxu0 0
        %1843 = vmatpush2.bf16.msra.mxu0 0
        %1844 = vmatprep.subr.bf16.mxu0 0
        %1845 = vmatpush2.bf16.msra.mxu0 0
        %1846 = vmatprep.subr.bf16.mxu0 0
        %1847 = vmatpush2.bf16.msra.mxu0 0
        %1848 = vmatprep.mubr.bf16.mxu0 0
        %1849 = vmatmul.mubr.bf16.gmra.mxu0 %v1811
        %v1850 = vpop.f32.mrf.mxu0
        %v1851 = vadd.f32 0.0, %v1850
        %v1852 = vpop.f32.mrf.mxu0
        %v1853 = vpop.f32.mrf.mxu0
        %v1854 = vpop.f32.mrf.mxu0
        %1855 = vdwg.mxu0
        %v1857 = vsel %vm1334, %v1758, 0
        %v1860 = vsel %vm1574, %v1762, 0
        %1862 = vmatprep.subr.bf16.mxu0 0
        %1863 = vmatpush1.bf16.msra.mxu0 0
        %1864 = vmatprep.subr.bf16.mxu0 0
        %1865 = vmatpush1.bf16.msra.mxu0 0
        %1866 = vmatprep.subr.bf16.mxu0 0
        %1867 = vmatpush1.bf16.msra.mxu0 0
        %1868 = vmatprep.subr.bf16.mxu0 0
        %1869 = vmatpush1.bf16.msra.mxu0 0
        %1870 = vmatprep.subr.bf16.mxu0 0
        %1871 = vmatpush1.bf16.msra.mxu0 0
        %1872 = vmatprep.subr.bf16.mxu0 0
        %1873 = vmatpush1.bf16.msra.mxu0 0
        %1874 = vmatprep.subr.bf16.mxu0 0
        %1875 = vmatpush1.bf16.msra.mxu0 0
        %1876 = vmatprep.subr.bf16.mxu0 0
        %1877 = vmatpush1.bf16.msra.mxu0 %v1860
        %1878 = vmatprep.subr.bf16.mxu0 0
        %1879 = vmatpush2.bf16.msra.mxu0 0
        %1880 = vmatprep.subr.bf16.mxu0 0
        %1881 = vmatpush2.bf16.msra.mxu0 0
        %1882 = vmatprep.subr.bf16.mxu0 0
        %1883 = vmatpush2.bf16.msra.mxu0 0
        %1884 = vmatprep.subr.bf16.mxu0 0
        %1885 = vmatpush2.bf16.msra.mxu0 0
        %1886 = vmatprep.subr.bf16.mxu0 0
        %1887 = vmatpush2.bf16.msra.mxu0 0
        %1888 = vmatprep.subr.bf16.mxu0 0
        %1889 = vmatpush2.bf16.msra.mxu0 0
        %1890 = vmatprep.subr.bf16.mxu0 0
        %1891 = vmatpush2.bf16.msra.mxu0 0
        %1892 = vmatprep.subr.bf16.mxu0 0
        %1893 = vmatpush2.bf16.msra.mxu0 0
        %1894 = vmatprep.mubr.bf16.mxu0 0
        %1895 = vmatmul.mubr.bf16.gmra.mxu0 %v1857
        %v1896 = vpop.f32.mrf.mxu0
        %v1897 = vadd.f32 0.0, %v1896
        %v1898 = vpop.f32.mrf.mxu0
        %v1899 = vpop.f32.mrf.mxu0
        %v1900 = vpop.f32.mrf.mxu0
        %1901 = vdwg.mxu0
        %v1903 = vsel %vm1334, %v1759, 0
        %v1906 = vsel %vm1574, %v1763, 0
        %1908 = vmatprep.subr.bf16.mxu0 0
        %1909 = vmatpush1.bf16.msra.mxu0 0
        %1910 = vmatprep.subr.bf16.mxu0 0
        %1911 = vmatpush1.bf16.msra.mxu0 0
        %1912 = vmatprep.subr.bf16.mxu0 0
        %1913 = vmatpush1.bf16.msra.mxu0 0
        %1914 = vmatprep.subr.bf16.mxu0 0
        %1915 = vmatpush1.bf16.msra.mxu0 0
        %1916 = vmatprep.subr.bf16.mxu0 0
        %1917 = vmatpush1.bf16.msra.mxu0 0
        %1918 = vmatprep.subr.bf16.mxu0 0
        %1919 = vmatpush1.bf16.msra.mxu0 0
        %1920 = vmatprep.subr.bf16.mxu0 0
        %1921 = vmatpush1.bf16.msra.mxu0 0
        %1922 = vmatprep.subr.bf16.mxu0 0
        %1923 = vmatpush1.bf16.msra.mxu0 %v1906
        %1924 = vmatprep.subr.bf16.mxu0 0
        %1925 = vmatpush2.bf16.msra.mxu0 0
        %1926 = vmatprep.subr.bf16.mxu0 0
        %1927 = vmatpush2.bf16.msra.mxu0 0
        %1928 = vmatprep.subr.bf16.mxu0 0
        %1929 = vmatpush2.bf16.msra.mxu0 0
        %1930 = vmatprep.subr.bf16.mxu0 0
        %1931 = vmatpush2.bf16.msra.mxu0 0
        %1932 = vmatprep.subr.bf16.mxu0 0
        %1933 = vmatpush2.bf16.msra.mxu0 0
        %1934 = vmatprep.subr.bf16.mxu0 0
        %1935 = vmatpush2.bf16.msra.mxu0 0
        %1936 = vmatprep.subr.bf16.mxu0 0
        %1937 = vmatpush2.bf16.msra.mxu0 0
        %1938 = vmatprep.subr.bf16.mxu0 0
        %1939 = vmatpush2.bf16.msra.mxu0 0
        %1940 = vmatprep.mubr.bf16.mxu0 0
        %1941 = vmatmul.mubr.bf16.gmra.mxu0 %v1903
        %v1942 = vpop.f32.mrf.mxu0
        %v1943 = vadd.f32 0.0, %v1942
        %v1944 = vpop.f32.mrf.mxu0
        %v1945 = vpop.f32.mrf.mxu0
        %v1946 = vpop.f32.mrf.mxu0
        %1947 = vdwg.mxu0
        %v1948 = vsel %vm622, %v1805, 0.0
        %v1949 = vsel %vm622, %v1851, 0.0
        %v1950 = vadd.f32 %v1948, %v1949
        %v1951 = vsel %vm622, %v1897, 0.0
        %v1952 = vadd.f32 %v1950, %v1951
        %v1953 = vsel %vm622, %v1943, 0.0
        %v1954 = vadd.f32 %v1952, %v1953
        %v1955 = vld [vmem:[%s8] sm:$0x1]
        %v1957 = vlaneseq
        %v1958 = vshrl.u32 %v1957, 7
        %v1959 = vsub.s32 0, %v1958
        %v1960 = vrot.slane %v1955, %v1959
        %v1962 = vadd.f32 %v1954, %v1960
        %v1963 = vadd.f32 %v564, %v1962
        %v1964 = vld [vmem:[%s9] sm:$0x1]
        %v1965 = vld [vmem:[%s10] sm:$0x1]
        %v1966 = vsel %vm622, %v1963, 0.0
        %1967 = vadd.xlane.f32.xlu0 %v1966
        %v1968 = vpop.xlane.xlu0 %1967
        %v1969 = vrcp.pop 32.0
        %v1970 = vmul.f32 %v1968, %v1969
        %v1971 = vsub.f32 %v1963, %v1970
        %v1972 = vmul.f32 %v1971, %v1971
        %v1973 = vsel %vm622, %v1972, 0.0
        %1974 = vadd.xlane.f32.xlu0 %v1973
        %v1975 = vpop.xlane.xlu0 %1974
        %v1976 = vmul.f32 %v1975, %v1969
        %v1977 = vadd.f32 %v1976, 1e-05
        %v1978 = vrsqrt.pop %v1977
        %v1979 = vmul.f32 %v1971, %v1978
        %v1981 = vlaneseq
        %v1982 = vshrl.u32 %v1981, 7
        %v1983 = vsub.s32 0, %v1982
        %v1984 = vrot.slane %v1964, %v1983
        %v1986 = vmul.f32 %v1979, %v1984
        %v1988 = vlaneseq
        %v1989 = vshrl.u32 %v1988, 7
        %v1990 = vsub.s32 0, %v1989
        %v1991 = vrot.slane %v1965, %v1990
        %v1993 = vadd.f32 %v1986, %v1991
        %v1994 = vpack.c.bf16 %v1993, %v1993
        %v1995 = vld [vmem:[%s11] sm:$0xf]
        %v1996 = vld [vmem:[%s11 + $0x4] sm:$0xf]
        %v1997 = vld [vmem:[%s11 + $0x8] sm:$0xf]
        %v1998 = vld [vmem:[%s11 + $0xc] sm:$0xf]
        %v1999 = vld [vmem:[%s12] sm:$0x1]
        %v2001 = vlaneseq
        %v2002 = vshrl.u32 %v2001, 7
        %v2003 = vsub.s32 0, %v2002
        %v2004 = vrot.slane %v1999, %v2003
        %v2010 = vunpack.c.l.b16 %v1995
        %v2011 = vunpack.c.l.b16 %v1996
        %v2012 = vunpack.c.l.b16 %v1997
        %v2013 = vunpack.c.l.b16 %v1998
        %v2014 = vpack.c.b16 %v2011, %v2010
        %v2015 = vpack.c.b16 %v2013, %v2012
        %v2019 = vsel %vm622, %v1994, 0
        %2021 = vmatprep.subr.bf16.mxu0 0
        %2022 = vmatpush1.bf16.msra.mxu0 0
        %2023 = vmatprep.subr.bf16.mxu0 0
        %2024 = vmatpush1.bf16.msra.mxu0 0
        %2025 = vmatprep.subr.bf16.mxu0 0
        %2026 = vmatpush1.bf16.msra.mxu0 0
        %2027 = vmatprep.subr.bf16.mxu0 0
        %2028 = vmatpush1.bf16.msra.mxu0 0
        %2029 = vmatprep.subr.bf16.mxu0 0
        %2030 = vmatpush1.bf16.msra.mxu0 0
        %2031 = vmatprep.subr.bf16.mxu0 0
        %2032 = vmatpush1.bf16.msra.mxu0 0
        %2033 = vmatprep.subr.bf16.mxu0 0
        %2034 = vmatpush1.bf16.msra.mxu0 %v2015
        %2035 = vmatprep.subr.bf16.mxu0 0
        %2036 = vmatpush1.bf16.msra.mxu0 %v2014
        %2037 = vmatprep.subr.bf16.mxu0 0
        %2038 = vmatpush2.bf16.msra.mxu0 0
        %2039 = vmatprep.subr.bf16.mxu0 0
        %2040 = vmatpush2.bf16.msra.mxu0 0
        %2041 = vmatprep.subr.bf16.mxu0 0
        %2042 = vmatpush2.bf16.msra.mxu0 0
        %2043 = vmatprep.subr.bf16.mxu0 0
        %2044 = vmatpush2.bf16.msra.mxu0 0
        %2045 = vmatprep.subr.bf16.mxu0 0
        %2046 = vmatpush2.bf16.msra.mxu0 0
        %2047 = vmatprep.subr.bf16.mxu0 0
        %2048 = vmatpush2.bf16.msra.mxu0 0
        %2049 = vmatprep.subr.bf16.mxu0 0
        %2050 = vmatpush2.bf16.msra.mxu0 0
        %2051 = vmatprep.subr.bf16.mxu0 0
        %2052 = vmatpush2.bf16.msra.mxu0 0
        %2053 = vmatprep.mubr.bf16.mxu0 0
        %2054 = vmatmul.mubr.bf16.gmra.mxu0 %v2019
        %v2055 = vpop.f32.mrf.mxu0
        %v2056 = vadd.f32 %v2004, %v2055
        %v2057 = vpop.f32.mrf.mxu0
        %v2058 = vpop.f32.mrf.mxu0
        %v2059 = vpop.f32.mrf.mxu0
        %2060 = vdwg.mxu0
        %v2061 = vmax.f32 %v2056, 0.0
        %v2062 = vpack.c.bf16 %v2061, %v2061
        %v2063 = vld [vmem:[%s13] sm:$0xf]
        %v2064 = vld [vmem:[%s13 + $0x4] sm:$0xf]
        %v2065 = vld [vmem:[%s13 + $0x8] sm:$0xf]
        %v2066 = vld [vmem:[%s13 + $0xc] sm:$0xf]
        %v2067 = vld [vmem:[%s13 + $0x10] sm:$0xf]
        %v2068 = vld [vmem:[%s13 + $0x14] sm:$0xf]
        %v2069 = vld [vmem:[%s13 + $0x18] sm:$0xf]
        %v2070 = vld [vmem:[%s13 + $0x1c] sm:$0xf]
        %v2071 = vld [vmem:[%s14] sm:$0x1]
        %v2073 = vlaneseq
        %v2074 = vshrl.u32 %v2073, 7
        %v2075 = vsub.s32 0, %v2074
        %v2076 = vrot.slane %v2071, %v2075
        %v2086 = vunpack.c.l.b16 %v2063
        %v2087 = vunpack.c.l.b16 %v2064
        %v2088 = vunpack.c.l.b16 %v2065
        %v2089 = vunpack.c.l.b16 %v2066
        %v2090 = vunpack.c.l.b16 %v2067
        %v2091 = vunpack.c.l.b16 %v2068
        %v2092 = vunpack.c.l.b16 %v2069
        %v2093 = vunpack.c.l.b16 %v2070
        %v2094 = vpack.c.b16 %v2087, %v2086
        %v2095 = vpack.c.b16 %v2089, %v2088
        %v2096 = vpack.c.b16 %v2091, %v2090
        %v2097 = vpack.c.b16 %v2093, %v2092
        %vm2102 = vcmask 523264
        %v2104 = vsel %vm2102, %v2062, 0
        %2106 = vmatprep.subr.bf16.mxu0 0
        %2107 = vmatpush1.bf16.msra.mxu0 0
        %2108 = vmatprep.subr.bf16.mxu0 0
        %2109 = vmatpush1.bf16.msra.mxu0 0
        %2110 = vmatprep.subr.bf16.mxu0 0
        %2111 = vmatpush1.bf16.msra.mxu0 0
        %2112 = vmatprep.subr.bf16.mxu0 0
        %2113 = vmatpush1.bf16.msra.mxu0 0
        %2114 = vmatprep.subr.bf16.mxu0 0
        %2115 = vmatpush1.bf16.msra.mxu0 %v2097
        %2116 = vmatprep.subr.bf16.mxu0 0
        %2117 = vmatpush1.bf16.msra.mxu0 %v2096
        %2118 = vmatprep.subr.bf16.mxu0 0
        %2119 = vmatpush1.bf16.msra.mxu0 %v2095
        %2120 = vmatprep.subr.bf16.mxu0 0
        %2121 = vmatpush1.bf16.msra.mxu0 %v2094
        %2122 = vmatprep.subr.bf16.mxu0 0
        %2123 = vmatpush2.bf16.msra.mxu0 0
        %2124 = vmatprep.subr.bf16.mxu0 0
        %2125 = vmatpush2.bf16.msra.mxu0 0
        %2126 = vmatprep.subr.bf16.mxu0 0
        %2127 = vmatpush2.bf16.msra.mxu0 0
        %2128 = vmatprep.subr.bf16.mxu0 0
        %2129 = vmatpush2.bf16.msra.mxu0 0
        %2130 = vmatprep.subr.bf16.mxu0 0
        %2131 = vmatpush2.bf16.msra.mxu0 0
        %2132 = vmatprep.subr.bf16.mxu0 0
        %2133 = vmatpush2.bf16.msra.mxu0 0
        %2134 = vmatprep.subr.bf16.mxu0 0
        %2135 = vmatpush2.bf16.msra.mxu0 0
        %2136 = vmatprep.subr.bf16.mxu0 0
        %2137 = vmatpush2.bf16.msra.mxu0 0
        %2138 = vmatprep.mubr.bf16.mxu0 0
        %2139 = vmatmul.mubr.bf16.gmra.mxu0 %v2104
        %v2140 = vpop.f32.mrf.mxu0
        %v2141 = vadd.f32 %v2076, %v2140
        %v2142 = vpop.f32.mrf.mxu0
        %v2143 = vpop.f32.mrf.mxu0
        %v2144 = vpop.f32.mrf.mxu0
        %2145 = vdwg.mxu0
        %v2146 = vadd.f32 %v1993, %v2141
        %v2147 = vld [vmem:[%s15] sm:$0x1]
        %v2148 = vld [vmem:[%s16] sm:$0x1]
        %v2149 = vsel %vm622, %v2146, 0.0
        %2150 = vadd.xlane.f32.xlu0 %v2149
        %v2151 = vpop.xlane.xlu0 %2150
        %v2152 = vmul.f32 %v2151, %v1969
        %v2153 = vsub.f32 %v2146, %v2152
        %v2154 = vmul.f32 %v2153, %v2153
        %v2155 = vsel %vm622, %v2154, 0.0
        %2156 = vadd.xlane.f32.xlu0 %v2155
        %v2157 = vpop.xlane.xlu0 %2156
        %v2158 = vmul.f32 %v2157, %v1969
        %v2159 = vadd.f32 %v2158, 1e-05
        %v2160 = vrsqrt.pop %v2159
        %v2161 = vmul.f32 %v2153, %v2160
        %v2163 = vlaneseq
        %v2164 = vshrl.u32 %v2163, 7
        %v2165 = vsub.s32 0, %v2164
        %v2166 = vrot.slane %v2147, %v2165
        %v2168 = vmul.f32 %v2161, %v2166
        %v2170 = vlaneseq
        %v2171 = vshrl.u32 %v2170, 7
        %v2172 = vsub.s32 0, %v2171
        %v2173 = vrot.slane %v2148, %v2172
        %v2175 = vadd.f32 %v2168, %v2173
        %2176 = vst.msk [vmem:[%s551] sm:$0xff] %vm622, %v2175
        %s2177 = sand.u32 %s413, 1
        %s2178 = scalar_lea.sflag [#allocation3], %s2177
        %s2179 = sand.u32 %s413, 1
        %s2180 = smul.addr %s2179, 8
        %s2181 = scalar_lea.vmem [#allocation2], %s2180
        // Predicated region
        $region93: #{tpu_custom_call.1} parent=87 // pred_check
          %p2182 = pneg %p423
        $region94: #{tpu_custom_call.1} parent=87 // pred_check_branch
          %2184 = sbr.rel (%p2182) target = $region96
        $region95: #{tpu_custom_call.1} parent=87 // pred_region
          %s2186 = ssub.s32 128, 128
          %2187 = vsyncadd %s2178, %s2186
          %s2188 = smul.addr %s35, 128
          %s2189 = scalar_lea.hbm %s17, %s2188
          %s2191 = sshll.u32 %s2181, 4
          %s2192 = int_to_ptr.vmem [resolvable:$true] %s2191
          %2194 = dma.vmem_to_hbm [thread:$0]  %s2192, 128, %s2189, %s2178
        $region96: #{tpu_custom_call.1} parent=87 // pred_fallthru
          _
      $region88: #{tpu_custom_call.1} parent=5 // pred_fallthru
        _
      %p2195 = scmp.le.s32.totalorder 2, %s26
      // Predicated region
      $region97: #{tpu_custom_call.1} parent=5 // pred_check
        %p2196 = pneg %p2195
      $region98: #{tpu_custom_call.1} parent=5 // pred_check_branch
        %2198 = sbr.rel (%p2196) target = $region100
      $region99: #{tpu_custom_call.1} parent=5 // pred_region
        %s2199 = ssub.s32 %s26, 2
        // Predicated region
        $region101: #{tpu_custom_call.1} parent=99 // pred_check
          %p2200 = pneg %p429
        $region102: #{tpu_custom_call.1} parent=99 // pred_check_branch
          %2202 = sbr.rel (%p2200) target = $region104
        $region103: #{tpu_custom_call.1} parent=99 // pred_region
          %s2203 = sand.u32 %s414, 1
          %s2204 = scalar_lea.sflag [#allocation3], %s2203
          %s2205 = sand.u32 %s414, 1
          %s2206 = smul.addr %s2205, 8
          %s2207 = scalar_lea.vmem [#allocation2], %s2206
          %2208 = dma.done %s2204, 128
        $region104: #{tpu_custom_call.1} parent=99 // pred_fallthru
          _
      $region100: #{tpu_custom_call.1} parent=5 // pred_fallthru
        _
    $region6: #{tpu_custom_call.1} parent=1 // loop_footer
      %s30 = sadd.s32 1, %s26
    $region7: #{tpu_custom_call.1} parent=1 // loop_footer_branch
      %25 = sbr.rel target = $region3
    $region8: #{tpu_custom_call.1} parent=1 // loop_exit
      _
    %2209 = vsyncpa [#allocation3], 1
    %s2210 = scalar_lea.sflag [#allocation3], 1
    %2211 = vsyncpa %s2210, 1

</llo_original>
